<compile_context>
chip_gen: v7x
topology: tpu7x:2x2x1
jax: 0.10.0
libtpu: 0.0.40
codegen_flags: <defaults>
</compile_context>

<pallas_src>
import functools

import jax
import jax.numpy as jnp
from jax.experimental import pallas as pl
from jax.experimental.pallas import tpu as pltpu


def _round_up(x, m):
    return ((x + m - 1) // m) * m


def _fp_kernel(xw_ref, in_pos_t_ref, in_sq_ref, in_batch_ref, skip_ref,
               w1b_ref, w1c_ref, b1_ref, w2_ref, b2_ref, out_ref,
               *, knn_num, c_skip_pad):
    skip = skip_ref[...]                                   # (TM, SLAB) f32
    skip_pos = skip[:, 0:8]                                # zero-padded (TM, 8)
    skip_x = skip[:, 8:8 + c_skip_pad]                     # (TM, C_skip_pad)
    skip_b = skip[:, 8 + c_skip_pad:9 + c_skip_pad]        # (TM, 1) batch id as f32

    # ---- pairwise squared distances in Gram form (MXU): ||a||^2 + ||b||^2 - 2 a.b ----
    sp2 = jnp.sum(skip_pos * skip_pos, axis=1, keepdims=True)            # (TM, 1)
    cross = jnp.dot(skip_pos, in_pos_t_ref[...],
                    preferred_element_type=jnp.float32)                  # (TM, N_in)
    d2 = jnp.maximum(sp2 + in_sq_ref[...] - 2.0 * cross, 0.0)

    # ---- batch-restricted knn: mask cross-batch pairs ----
    BIG = jnp.float32(1e30)
    remaining = jnp.where(skip_b == in_batch_ref[...], d2, BIG)

    # ---- fused k-smallest selection + inverse-distance weight accumulation ----
    # One XLU row-min and one (TM,1) EUP rsqrt per iteration; cross-batch /
    # exhausted columns are never picked (m < BIG guard).
    w = jnp.zeros_like(remaining)
    for _ in range(knn_num):
        m = jnp.min(remaining, axis=1, keepdims=True)                    # (TM, 1)
        # 1 / max(sqrt(m), 1e-10)  ==  min(rsqrt(m), 1e10)
        inv = jnp.minimum(jax.lax.rsqrt(jnp.maximum(m, 0.0)), jnp.float32(1e10))
        pick = jnp.logical_and(remaining == m, m < BIG)
        w = jnp.where(pick, inv, w)
        remaining = jnp.where(pick, BIG, remaining)

    # ---- per-target normalizer, applied AFTER the interpolation matmul ----
    wsum = jnp.sum(w, axis=1, keepdims=True) + jnp.float32(1e-16)        # (TM, 1)
    inv_wsum = pl.reciprocal(wsum, approx=True)                          # EUP

    # ---- 'add' aggregation fused with the first Linear ----
    #   aggr @ W1a == (w_unnorm @ (in_x @ W1a)) * inv_wsum
    h = (jnp.dot(w.astype(jnp.bfloat16), xw_ref[...],
                 preferred_element_type=jnp.float32) * inv_wsum
         + jnp.dot(skip_x, w1b_ref[...], preferred_element_type=jnp.float32)
         + jnp.dot(skip_pos, w1c_ref[...], preferred_element_type=jnp.float32)
         + b1_ref[...])
    h = jnp.maximum(h, 0.0)

    o = jnp.dot(h.astype(jnp.bfloat16), w2_ref[...],
                preferred_element_type=jnp.float32) + b2_ref[...]
    # TODO(synk): torch's mlp is user-supplied; modeled as Lin->ReLU->Lin->ReLU
    # (no BatchNorm1d / Dropout).
    out_ref[...] = jnp.maximum(o, 0.0).astype(out_ref.dtype)


def _vmem_limit_bytes():
    cap = None
    try:
        cap = getattr(pltpu.get_tpu_info(), "vmem_capacity_bytes", None)
    except Exception:
        cap = None
    if not cap:
        cap = 64 * 1024 * 1024          # conservative: v7x per-TC VMEM
    return int(0.75 * cap)              # ~48 MiB on v7x, ~96 MiB on v5e/v6e


def _pick_tile_m(requested, n_skip, n_in, h_pad, co_pad, slab_w, vmem_limit):
    n_skip8 = _round_up(max(n_skip, 8), 8)
    if requested is None:
        # resident in-level tensors (single-buffered): xw bf16 + pos_t + sq + batch
        resident = n_in * (2 * h_pad + 4 * 8 + 4 * 2)
        # ~6 live (TM, N_in) f32 intermediates + double-buffered row-tiled IO
        per_row = 6 * n_in * 4 + 2 * (slab_w + co_pad + h_pad) * 4
        budget = vmem_limit - resident - (4 << 20)
        tm = budget // max(per_row, 1)
        tm = min(tm, 512 if vmem_limit >= (72 << 20) else 128)   # v5e/v6e vs v7x cap
    else:
        tm = int(requested)
    if n_skip8 >= 16:                    # >= 2 grid steps so v7x's 2 TCs both get work
        tm = min(tm, -(-n_skip8 // 2))
    tm = max(8, (int(tm) // 8) * 8)      # 8-sublane aligned row tile
    return min(tm, n_skip8)


def pointnet2_fp_module(in_x, in_pos, in_batch, skip_x, skip_pos, skip_batch,
                        params, knn_num, tile_m=None):
    """Returns (x1, pos1, batch1) exactly like PointNet2FPModule.forward."""
    n_in, c_in = in_x.shape
    n_skip, c_skip = skip_x.shape
    w1, b1, w2, b2 = params
    hidden = w1.shape[1]
    c_out = w2.shape[1]

    # ---- pad hidden / c_out to lane-dense multiples of 128 (zero pad, sliced off) ----
    h_pad = _round_up(hidden, 128)
    co_pad = _round_up(c_out, 128)
    cs_pad = _round_up(c_skip, 8)

    w1p = jnp.pad(w1, ((0, 0), (0, h_pad - hidden)))
    b1p = jnp.pad(b1.reshape(1, -1), ((0, 0), (0, h_pad - hidden)))
    w2p = jnp.pad(w2, ((0, h_pad - hidden), (0, co_pad - c_out)))
    b2p = jnp.pad(b2.reshape(1, -1), ((0, 0), (0, co_pad - c_out)))

    # split W1 rows so concat([aggr, skip_x, skip_pos]) becomes separate matmuls
    w1a = w1p[:c_in]                                                     # (C_in, H_pad)
    w1b = jnp.pad(w1p[c_in:c_in + c_skip], ((0, cs_pad - c_skip), (0, 0)))
    w1c = jnp.pad(w1p[c_in + c_skip:], ((0, 5), (0, 0)))                 # (8, H_pad)

    # fuse interpolation with the first Linear (prologue, outside the kernel)
    xw = jnp.dot(in_x, w1a).astype(jnp.bfloat16)                         # (N_in, H_pad)
    w2_bf = w2p.astype(jnp.bfloat16)

    # in-level tensors; position contraction padded 3 -> 8 for clean MXU pushes
    in_pos_t = jnp.pad(jnp.transpose(in_pos), ((0, 5), (0, 0)))          # (8, N_in)
    in_sq = jnp.sum(in_pos * in_pos, axis=1).reshape(1, n_in)            # (1, N_in)
    in_batch_f = in_batch.astype(jnp.float32).reshape(1, n_in)           # (1, N_in)

    vmem_limit = _vmem_limit_bytes()
    slab_w = _round_up(8 + cs_pad + 1, 128)
    tm = _pick_tile_m(tile_m, n_skip, n_in, h_pad, co_pad, slab_w, vmem_limit)
    n_pad = _round_up(n_skip, tm)

    # pack skip_pos / skip_x / skip_batch into ONE lane-dense f32 slab (1 DMA / step)
    skip_slab = jnp.zeros((n_pad, slab_w), jnp.float32)
    skip_slab = skip_slab.at[:n_skip, 0:3].set(skip_pos)
    skip_slab = skip_slab.at[:n_skip, 8:8 + c_skip].set(skip_x)
    skip_slab = skip_slab.at[:n_skip, 8 + cs_pad].set(skip_batch.astype(jnp.float32))

    grid = (n_pad // tm,)
    kernel = functools.partial(_fp_kernel, knn_num=knn_num, c_skip_pad=cs_pad)

    # TODO(synk): for very large N_in (>~32K points) the (TM, N_in) working set and the
    # resident xw should be chunked over N_in with an inner pipeline carrying running
    # k-min / weight state; the single-shot path is assumed here.

    def _call(single_buffer_residents):
        def resident(arr):
            kw = {}
            if single_buffer_residents:
                kw["pipeline_mode"] = pl.Buffered(1)   # constant block index: 1 buffer
            return pl.BlockSpec(arr.shape, lambda i, _n=arr.ndim: (0,) * _n, **kw)

        def row_tiled(last):
            return pl.BlockSpec((tm, last), lambda i: (i, 0))

        return pl.pallas_call(
            kernel,
            out_shape=jax.ShapeDtypeStruct((n_pad, co_pad), jnp.float32),
            grid=grid,
            in_specs=[
                resident(xw),                 # (N_in, H_pad) bf16, stays resident
                resident(in_pos_t),           # (8, N_in)
                resident(in_sq),              # (1, N_in)
                resident(in_batch_f),         # (1, N_in)
                row_tiled(slab_w),            # packed skip slab (TM, SLAB)
                resident(w1b), resident(w1c), resident(b1p),
                resident(w2_bf), resident(b2p),
            ],
            out_specs=row_tiled(co_pad),
            compiler_params=pltpu.CompilerParams(
                dimension_semantics=("parallel",),
                vmem_limit_bytes=vmem_limit),
        )(xw, in_pos_t, in_sq, in_batch_f, skip_slab,
          w1b, w1c, b1p, w2_bf, b2p)

    try:
        x1_padded = _call(True)
    except Exception:
        # pipeline_mode=pl.Buffered(1) unsupported on this jax version -> default specs
        x1_padded = _call(False)

    x1 = x1_padded[:n_skip, :c_out]
    return x1, skip_pos, skip_batch


if __name__ == "__main__":
    key = jax.random.PRNGKey(0)

    # small, module-consistent shapes
    B = 2                              # batches
    n_in_per, n_skip_per = 8, 16
    N_in, N_skip = B * n_in_per, B * n_skip_per
    C_in, C_skip = 8, 4                # coarse-level / skip-level feature widths
    knn_num = 3
    hidden, C_out = 32, 16

    ks = jax.random.split(key, 6)
    in_x = jax.random.normal(ks[0], (N_in, C_in), jnp.float32)
    in_pos = jax.random.normal(ks[1], (N_in, 3), jnp.float32)
    skip_x = jax.random.normal(ks[2], (N_skip, C_skip), jnp.float32)
    skip_pos = jax.random.normal(ks[3], (N_skip, 3), jnp.float32)
    in_batch = jnp.repeat(jnp.arange(B, dtype=jnp.int32), n_in_per)
    skip_batch = jnp.repeat(jnp.arange(B, dtype=jnp.int32), n_skip_per)

    # deterministic MLP parameters (torch.nn.Linear-style uniform init)
    c_total = C_in + C_skip + 3

    def lin_init(k, fan_in, fan_out):
        bound = 1.0 / (fan_in ** 0.5)
        kw, kb = jax.random.split(k)
        w = jax.random.uniform(kw, (fan_in, fan_out), jnp.float32, -bound, bound)
        b = jax.random.uniform(kb, (1, fan_out), jnp.float32, -bound, bound)
        return w, b

    w1, b1 = lin_init(ks[4], c_total, hidden)
    w2, b2 = lin_init(ks[5], hidden, C_out)

    # tile_m=16 -> grid=(2,) so the demo exercises a multi-step 'parallel' grid.
    x1, pos1, batch1 = pointnet2_fp_module(
        in_x, in_pos, in_batch, skip_x, skip_pos, skip_batch,
        (w1, b1, w2, b2), knn_num, tile_m=16)

    jax.block_until_ready((x1, pos1, batch1))
    assert x1.shape == (N_skip, C_out)
    assert pos1.shape == (N_skip, 3) and batch1.shape == (N_skip,)
    assert bool(jnp.all(jnp.isfinite(x1)))
    print("KERNEL_OK")
</pallas_src>

<mosaic_0001>
module attributes {stable_mosaic.version = 11 : i64} {
  func.func @_fp_kernel(%arg0: i32, %arg1: memref<16x128xbf16, #tpu.memory_space<vmem>>, %arg2: memref<8x16xf32, #tpu.memory_space<vmem>>, %arg3: memref<1x16xf32, #tpu.memory_space<vmem>>, %arg4: memref<1x16xf32, #tpu.memory_space<vmem>>, %arg5: memref<16x128xf32, #tpu.memory_space<vmem>>, %arg6: memref<8x128xf32, #tpu.memory_space<vmem>>, %arg7: memref<8x128xf32, #tpu.memory_space<vmem>>, %arg8: memref<1x128xf32, #tpu.memory_space<vmem>>, %arg9: memref<128x128xbf16, #tpu.memory_space<vmem>>, %arg10: memref<1x128xf32, #tpu.memory_space<vmem>>, %arg11: memref<16x128xf32, #tpu.memory_space<vmem>>) attributes {dimension_semantics = [#tpu.dimension_semantics<parallel>], iteration_bounds = array<i64: 2>, scalar_prefetch = 0 : i64, scratch_operands = 0 : i64, tpu.core_type = #tpu.core_type<tc>, window_params = [{pipeline_mode = #tpu.pipeline_mode<synchronous>, transform_indices = @transform_0, window_bounds = array<i64: 16, 128>}, {pipeline_mode = #tpu.pipeline_mode<synchronous>, transform_indices = @transform_1, window_bounds = array<i64: 8, 16>}, {pipeline_mode = #tpu.pipeline_mode<synchronous>, transform_indices = @transform_2, window_bounds = array<i64: 1, 16>}, {pipeline_mode = #tpu.pipeline_mode<synchronous>, transform_indices = @transform_3, window_bounds = array<i64: 1, 16>}, {transform_indices = @transform_4, window_bounds = array<i64: 16, 128>}, {pipeline_mode = #tpu.pipeline_mode<synchronous>, transform_indices = @transform_5, window_bounds = array<i64: 8, 128>}, {pipeline_mode = #tpu.pipeline_mode<synchronous>, transform_indices = @transform_6, window_bounds = array<i64: 8, 128>}, {pipeline_mode = #tpu.pipeline_mode<synchronous>, transform_indices = @transform_7, window_bounds = array<i64: 1, 128>}, {pipeline_mode = #tpu.pipeline_mode<synchronous>, transform_indices = @transform_8, window_bounds = array<i64: 128, 128>}, {pipeline_mode = #tpu.pipeline_mode<synchronous>, transform_indices = @transform_9, window_bounds = array<i64: 1, 128>}, {transform_indices = @transform_10, window_bounds = array<i64: 16, 128>}]} {
    %c0 = arith.constant 0 : index
    %c0_0 = arith.constant 0 : index
    %0 = vector.load %arg5[%c0, %c0_0] : memref<16x128xf32, #tpu.memory_space<vmem>>, vector<16x128xf32>
    %1 = vector.extract_strided_slice %0 {offsets = [0, 0], sizes = [16, 8], strides = [1, 1]} : vector<16x128xf32> to vector<16x8xf32>
    %2 = vector.extract_strided_slice %0 {offsets = [0, 8], sizes = [16, 8], strides = [1, 1]} : vector<16x128xf32> to vector<16x8xf32>
    %3 = vector.extract_strided_slice %0 {offsets = [0, 16], sizes = [16, 1], strides = [1, 1]} : vector<16x128xf32> to vector<16x1xf32>
    %4 = arith.mulf %1, %1 : vector<16x8xf32>
    %cst = arith.constant dense<0.000000e+00> : vector<16xf32>
    %5 = vector.multi_reduction <add>, %4, %cst [1] : vector<16x8xf32> to vector<16xf32>
    %6 = vector.shape_cast %5 : vector<16xf32> to vector<16x1xf32>
    %c0_1 = arith.constant 0 : index
    %c0_2 = arith.constant 0 : index
    %7 = vector.load %arg2[%c0_1, %c0_2] : memref<8x16xf32, #tpu.memory_space<vmem>>, vector<8x16xf32>
    %cst_3 = arith.constant dense<0.000000e+00> : vector<16x16xf32>
    %8 = tpu.matmul %1, %7, %cst_3 {dimension_numbers = #tpu.dot_dimension_numbers<[1], [0], [0], [1], [0, 0, 1, 1], [], []>} : vector<16x8xf32>, vector<8x16xf32>, vector<16x16xf32> -> vector<16x16xf32>
    %c0_4 = arith.constant 0 : index
    %c0_5 = arith.constant 0 : index
    %9 = vector.load %arg3[%c0_4, %c0_5] : memref<1x16xf32, #tpu.memory_space<vmem>>, vector<1x16xf32>
    %10 = vector.broadcast %6 : vector<16x1xf32> to vector<16x16xf32>
    %11 = vector.broadcast %9 : vector<1x16xf32> to vector<16x16xf32>
    %12 = arith.addf %10, %11 : vector<16x16xf32>
    %cst_6 = arith.constant 2.000000e+00 : f32
    %13 = vector.broadcast %cst_6 : f32 to vector<16x16xf32>
    %14 = arith.mulf %13, %8 : vector<16x16xf32>
    %15 = arith.subf %12, %14 : vector<16x16xf32>
    %cst_7 = arith.constant 0.000000e+00 : f32
    %16 = vector.broadcast %cst_7 : f32 to vector<16x16xf32>
    %17 = arith.maximumf %15, %16 : vector<16x16xf32>
    %c0_8 = arith.constant 0 : index
    %c0_9 = arith.constant 0 : index
    %18 = vector.load %arg4[%c0_8, %c0_9] : memref<1x16xf32, #tpu.memory_space<vmem>>, vector<1x16xf32>
    %19 = vector.broadcast %3 : vector<16x1xf32> to vector<16x16xf32>
    %20 = vector.broadcast %18 : vector<1x16xf32> to vector<16x16xf32>
    %21 = arith.cmpf oeq, %19, %20 : vector<16x16xf32>
    %cst_10 = arith.constant 1.000000e+30 : f32
    %22 = vector.broadcast %cst_10 : f32 to vector<16x16xf32>
    %23 = arith.select %21, %17, %22 : vector<16x16xi1>, vector<16x16xf32>
    %cst_11 = arith.constant 0.000000e+00 : f32
    %24 = vector.broadcast %cst_11 : f32 to vector<16x16xf32>
    %cst_12 = arith.constant dense<0x7F800000> : vector<16xf32>
    %25 = vector.multi_reduction <minimumf>, %23, %cst_12 [1] : vector<16x16xf32> to vector<16xf32>
    %26 = vector.shape_cast %25 : vector<16xf32> to vector<16x1xf32>
    %cst_13 = arith.constant 0.000000e+00 : f32
    %27 = vector.broadcast %cst_13 : f32 to vector<16x1xf32>
    %28 = arith.maximumf %26, %27 : vector<16x1xf32>
    %29 = math.rsqrt %28 : vector<16x1xf32>
    %cst_14 = arith.constant 1.000000e+10 : f32
    %30 = vector.broadcast %cst_14 : f32 to vector<16x1xf32>
    %31 = arith.minimumf %29, %30 : vector<16x1xf32>
    %32 = vector.broadcast %26 : vector<16x1xf32> to vector<16x16xf32>
    %33 = arith.cmpf oeq, %23, %32 : vector<16x16xf32>
    %cst_15 = arith.constant 1.000000e+30 : f32
    %34 = vector.broadcast %cst_15 : f32 to vector<16x1xf32>
    %35 = arith.cmpf olt, %26, %34 : vector<16x1xf32>
    %36 = vector.broadcast %35 : vector<16x1xi1> to vector<16x16xi1>
    %37 = arith.andi %33, %36 : vector<16x16xi1>
    %38 = vector.shape_cast %31 : vector<16x1xf32> to vector<16x1xf32>
    %39 = vector.broadcast %38 : vector<16x1xf32> to vector<16x16xf32>
    %40 = arith.select %37, %39, %24 : vector<16x16xi1>, vector<16x16xf32>
    %cst_16 = arith.constant 1.000000e+30 : f32
    %41 = vector.broadcast %cst_16 : f32 to vector<16x16xf32>
    %42 = arith.select %37, %41, %23 : vector<16x16xi1>, vector<16x16xf32>
    %cst_17 = arith.constant dense<0x7F800000> : vector<16xf32>
    %43 = vector.multi_reduction <minimumf>, %42, %cst_17 [1] : vector<16x16xf32> to vector<16xf32>
    %44 = vector.shape_cast %43 : vector<16xf32> to vector<16x1xf32>
    %cst_18 = arith.constant 0.000000e+00 : f32
    %45 = vector.broadcast %cst_18 : f32 to vector<16x1xf32>
    %46 = arith.maximumf %44, %45 : vector<16x1xf32>
    %47 = math.rsqrt %46 : vector<16x1xf32>
    %cst_19 = arith.constant 1.000000e+10 : f32
    %48 = vector.broadcast %cst_19 : f32 to vector<16x1xf32>
    %49 = arith.minimumf %47, %48 : vector<16x1xf32>
    %50 = vector.broadcast %44 : vector<16x1xf32> to vector<16x16xf32>
    %51 = arith.cmpf oeq, %42, %50 : vector<16x16xf32>
    %cst_20 = arith.constant 1.000000e+30 : f32
    %52 = vector.broadcast %cst_20 : f32 to vector<16x1xf32>
    %53 = arith.cmpf olt, %44, %52 : vector<16x1xf32>
    %54 = vector.broadcast %53 : vector<16x1xi1> to vector<16x16xi1>
    %55 = arith.andi %51, %54 : vector<16x16xi1>
    %56 = vector.shape_cast %49 : vector<16x1xf32> to vector<16x1xf32>
    %57 = vector.broadcast %56 : vector<16x1xf32> to vector<16x16xf32>
    %58 = arith.select %55, %57, %40 : vector<16x16xi1>, vector<16x16xf32>
    %cst_21 = arith.constant 1.000000e+30 : f32
    %59 = vector.broadcast %cst_21 : f32 to vector<16x16xf32>
    %60 = arith.select %55, %59, %42 : vector<16x16xi1>, vector<16x16xf32>
    %cst_22 = arith.constant dense<0x7F800000> : vector<16xf32>
    %61 = vector.multi_reduction <minimumf>, %60, %cst_22 [1] : vector<16x16xf32> to vector<16xf32>
    %62 = vector.shape_cast %61 : vector<16xf32> to vector<16x1xf32>
    %cst_23 = arith.constant 0.000000e+00 : f32
    %63 = vector.broadcast %cst_23 : f32 to vector<16x1xf32>
    %64 = arith.maximumf %62, %63 : vector<16x1xf32>
    %65 = math.rsqrt %64 : vector<16x1xf32>
    %cst_24 = arith.constant 1.000000e+10 : f32
    %66 = vector.broadcast %cst_24 : f32 to vector<16x1xf32>
    %67 = arith.minimumf %65, %66 : vector<16x1xf32>
    %68 = vector.broadcast %62 : vector<16x1xf32> to vector<16x16xf32>
    %69 = arith.cmpf oeq, %60, %68 : vector<16x16xf32>
    %cst_25 = arith.constant 1.000000e+30 : f32
    %70 = vector.broadcast %cst_25 : f32 to vector<16x1xf32>
    %71 = arith.cmpf olt, %62, %70 : vector<16x1xf32>
    %72 = vector.broadcast %71 : vector<16x1xi1> to vector<16x16xi1>
    %73 = arith.andi %69, %72 : vector<16x16xi1>
    %74 = vector.shape_cast %67 : vector<16x1xf32> to vector<16x1xf32>
    %75 = vector.broadcast %74 : vector<16x1xf32> to vector<16x16xf32>
    %76 = arith.select %73, %75, %58 : vector<16x16xi1>, vector<16x16xf32>
    %cst_26 = arith.constant dense<0.000000e+00> : vector<16xf32>
    %77 = vector.multi_reduction <add>, %76, %cst_26 [1] : vector<16x16xf32> to vector<16xf32>
    %78 = vector.shape_cast %77 : vector<16xf32> to vector<16x1xf32>
    %cst_27 = arith.constant 1.000000e-16 : f32
    %79 = vector.broadcast %cst_27 : f32 to vector<16x1xf32>
    %80 = arith.addf %78, %79 : vector<16x1xf32>
    %81 = tpu.reciprocal %80 {approx = true} : vector<16x1xf32> -> vector<16x1xf32>
    %82 = arith.truncf %76 : vector<16x16xf32> to vector<16x16xbf16>
    %c0_28 = arith.constant 0 : index
    %c0_29 = arith.constant 0 : index
    %83 = vector.load %arg1[%c0_28, %c0_29] : memref<16x128xbf16, #tpu.memory_space<vmem>>, vector<16x128xbf16>
    %cst_30 = arith.constant dense<0.000000e+00> : vector<16x128xf32>
    %84 = tpu.matmul %82, %83, %cst_30 {dimension_numbers = #tpu.dot_dimension_numbers<[1], [0], [0], [1], [0, 0, 1, 1], [], []>} : vector<16x16xbf16>, vector<16x128xbf16>, vector<16x128xf32> -> vector<16x128xf32>
    %85 = vector.broadcast %81 : vector<16x1xf32> to vector<16x128xf32>
    %86 = arith.mulf %84, %85 : vector<16x128xf32>
    %c0_31 = arith.constant 0 : index
    %c0_32 = arith.constant 0 : index
    %87 = vector.load %arg6[%c0_31, %c0_32] : memref<8x128xf32, #tpu.memory_space<vmem>>, vector<8x128xf32>
    %cst_33 = arith.constant dense<0.000000e+00> : vector<16x128xf32>
    %88 = tpu.matmul %2, %87, %cst_33 {dimension_numbers = #tpu.dot_dimension_numbers<[1], [0], [0], [1], [0, 0, 1, 1], [], []>} : vector<16x8xf32>, vector<8x128xf32>, vector<16x128xf32> -> vector<16x128xf32>
    %89 = arith.addf %86, %88 : vector<16x128xf32>
    %c0_34 = arith.constant 0 : index
    %c0_35 = arith.constant 0 : index
    %90 = vector.load %arg7[%c0_34, %c0_35] : memref<8x128xf32, #tpu.memory_space<vmem>>, vector<8x128xf32>
    %cst_36 = arith.constant dense<0.000000e+00> : vector<16x128xf32>
    %91 = tpu.matmul %1, %90, %cst_36 {dimension_numbers = #tpu.dot_dimension_numbers<[1], [0], [0], [1], [0, 0, 1, 1], [], []>} : vector<16x8xf32>, vector<8x128xf32>, vector<16x128xf32> -> vector<16x128xf32>
    %92 = arith.addf %89, %91 : vector<16x128xf32>
    %c0_37 = arith.constant 0 : index
    %c0_38 = arith.constant 0 : index
    %93 = vector.load %arg8[%c0_37, %c0_38] : memref<1x128xf32, #tpu.memory_space<vmem>>, vector<1x128xf32>
    %94 = vector.broadcast %93 : vector<1x128xf32> to vector<16x128xf32>
    %95 = arith.addf %92, %94 : vector<16x128xf32>
    %cst_39 = arith.constant 0.000000e+00 : f32
    %96 = vector.broadcast %cst_39 : f32 to vector<16x128xf32>
    %97 = arith.maximumf %95, %96 : vector<16x128xf32>
    %98 = arith.truncf %97 : vector<16x128xf32> to vector<16x128xbf16>
    %c0_40 = arith.constant 0 : index
    %c0_41 = arith.constant 0 : index
    %99 = vector.load %arg9[%c0_40, %c0_41] : memref<128x128xbf16, #tpu.memory_space<vmem>>, vector<128x128xbf16>
    %cst_42 = arith.constant dense<0.000000e+00> : vector<16x128xf32>
    %100 = tpu.matmul %98, %99, %cst_42 {dimension_numbers = #tpu.dot_dimension_numbers<[1], [0], [0], [1], [0, 0, 1, 1], [], []>} : vector<16x128xbf16>, vector<128x128xbf16>, vector<16x128xf32> -> vector<16x128xf32>
    %c0_43 = arith.constant 0 : index
    %c0_44 = arith.constant 0 : index
    %101 = vector.load %arg10[%c0_43, %c0_44] : memref<1x128xf32, #tpu.memory_space<vmem>>, vector<1x128xf32>
    %102 = vector.broadcast %101 : vector<1x128xf32> to vector<16x128xf32>
    %103 = arith.addf %100, %102 : vector<16x128xf32>
    %cst_45 = arith.constant 0.000000e+00 : f32
    %104 = vector.broadcast %cst_45 : f32 to vector<16x128xf32>
    %105 = arith.maximumf %103, %104 : vector<16x128xf32>
    %c0_46 = arith.constant 0 : index
    %c0_47 = arith.constant 0 : index
    %106 = vector.load %arg11[%c0_46, %c0_47] : memref<16x128xf32, #tpu.memory_space<vmem>>, vector<16x128xf32>
    tpu.vector_store %arg11[%c0_46, %c0_47], %105 {strides = array<i32>} : memref<16x128xf32, #tpu.memory_space<vmem>>, vector<16x128xf32>,
    return
  }
  func.func @transform_0(%arg0: i32) -> (i32, i32) {
    %c0_i32 = arith.constant 0 : i32
    %c0_i32_0 = arith.constant 0 : i32
    %c0_i32_1 = arith.constant 0 : i32
    return %c0_i32, %c0_i32_0 : i32, i32
  }
  func.func @transform_1(%arg0: i32) -> (i32, i32) {
    %c0_i32 = arith.constant 0 : i32
    %c0_i32_0 = arith.constant 0 : i32
    %c0_i32_1 = arith.constant 0 : i32
    return %c0_i32, %c0_i32_0 : i32, i32
  }
  func.func @transform_2(%arg0: i32) -> (i32, i32) {
    %c0_i32 = arith.constant 0 : i32
    %c0_i32_0 = arith.constant 0 : i32
    %c0_i32_1 = arith.constant 0 : i32
    return %c0_i32, %c0_i32_0 : i32, i32
  }
  func.func @transform_3(%arg0: i32) -> (i32, i32) {
    %c0_i32 = arith.constant 0 : i32
    %c0_i32_0 = arith.constant 0 : i32
    %c0_i32_1 = arith.constant 0 : i32
    return %c0_i32, %c0_i32_0 : i32, i32
  }
  func.func @transform_4(%arg0: i32) -> (i32, i32) {
    %c0_i32 = arith.constant 0 : i32
    %c0_i32_0 = arith.constant 0 : i32
    return %arg0, %c0_i32 : i32, i32
  }
  func.func @transform_5(%arg0: i32) -> (i32, i32) {
    %c0_i32 = arith.constant 0 : i32
    %c0_i32_0 = arith.constant 0 : i32
    %c0_i32_1 = arith.constant 0 : i32
    return %c0_i32, %c0_i32_0 : i32, i32
  }
  func.func @transform_6(%arg0: i32) -> (i32, i32) {
    %c0_i32 = arith.constant 0 : i32
    %c0_i32_0 = arith.constant 0 : i32
    %c0_i32_1 = arith.constant 0 : i32
    return %c0_i32, %c0_i32_0 : i32, i32
  }
  func.func @transform_7(%arg0: i32) -> (i32, i32) {
    %c0_i32 = arith.constant 0 : i32
    %c0_i32_0 = arith.constant 0 : i32
    %c0_i32_1 = arith.constant 0 : i32
    return %c0_i32, %c0_i32_0 : i32, i32
  }
  func.func @transform_8(%arg0: i32) -> (i32, i32) {
    %c0_i32 = arith.constant 0 : i32
    %c0_i32_0 = arith.constant 0 : i32
    %c0_i32_1 = arith.constant 0 : i32
    return %c0_i32, %c0_i32_0 : i32, i32
  }
  func.func @transform_9(%arg0: i32) -> (i32, i32) {
    %c0_i32 = arith.constant 0 : i32
    %c0_i32_0 = arith.constant 0 : i32
    %c0_i32_1 = arith.constant 0 : i32
    return %c0_i32, %c0_i32_0 : i32, i32
  }
  func.func @transform_10(%arg0: i32) -> (i32, i32) {
    %c0_i32 = arith.constant 0 : i32
    %c0_i32_0 = arith.constant 0 : i32
    return %arg0, %c0_i32 : i32, i32
  }
}

module attributes {stable_mosaic.version = 11 : i64} {
  func.func @_fp_kernel(%arg0: i32, %arg1: memref<16x128xbf16, #tpu.memory_space<vmem>>, %arg2: memref<8x16xf32, #tpu.memory_space<vmem>>, %arg3: memref<1x16xf32, #tpu.memory_space<vmem>>, %arg4: memref<1x16xf32, #tpu.memory_space<vmem>>, %arg5: memref<16x128xf32, #tpu.memory_space<vmem>>, %arg6: memref<8x128xf32, #tpu.memory_space<vmem>>, %arg7: memref<8x128xf32, #tpu.memory_space<vmem>>, %arg8: memref<1x128xf32, #tpu.memory_space<vmem>>, %arg9: memref<128x128xbf16, #tpu.memory_space<vmem>>, %arg10: memref<1x128xf32, #tpu.memory_space<vmem>>, %arg11: memref<16x128xf32, #tpu.memory_space<vmem>>) attributes {dimension_semantics = [#tpu.dimension_semantics<parallel>], iteration_bounds = array<i64: 2>, scalar_prefetch = 0 : i64, scratch_operands = 0 : i64, tpu.core_type = #tpu.core_type<tc>, window_params = [{pipeline_mode = #tpu.pipeline_mode<synchronous>, transform_indices = @transform_0, window_bounds = array<i64: 16, 128>}, {pipeline_mode = #tpu.pipeline_mode<synchronous>, transform_indices = @transform_1, window_bounds = array<i64: 8, 16>}, {pipeline_mode = #tpu.pipeline_mode<synchronous>, transform_indices = @transform_2, window_bounds = array<i64: 1, 16>}, {pipeline_mode = #tpu.pipeline_mode<synchronous>, transform_indices = @transform_3, window_bounds = array<i64: 1, 16>}, {transform_indices = @transform_4, window_bounds = array<i64: 16, 128>}, {pipeline_mode = #tpu.pipeline_mode<synchronous>, transform_indices = @transform_5, window_bounds = array<i64: 8, 128>}, {pipeline_mode = #tpu.pipeline_mode<synchronous>, transform_indices = @transform_6, window_bounds = array<i64: 8, 128>}, {pipeline_mode = #tpu.pipeline_mode<synchronous>, transform_indices = @transform_7, window_bounds = array<i64: 1, 128>}, {pipeline_mode = #tpu.pipeline_mode<synchronous>, transform_indices = @transform_8, window_bounds = array<i64: 128, 128>}, {pipeline_mode = #tpu.pipeline_mode<synchronous>, transform_indices = @transform_9, window_bounds = array<i64: 1, 128>}, {transform_indices = @transform_10, window_bounds = array<i64: 16, 128>}]} {
    %c0 = arith.constant 0 : index
    %c0_0 = arith.constant 0 : index
    %0 = vector.load %arg5[%c0, %c0_0] : memref<16x128xf32, #tpu.memory_space<vmem>>, vector<16x128xf32>
    %1 = vector.extract_strided_slice %0 {offsets = [0, 0], sizes = [16, 8], strides = [1, 1]} : vector<16x128xf32> to vector<16x8xf32>
    %2 = vector.extract_strided_slice %0 {offsets = [0, 8], sizes = [16, 8], strides = [1, 1]} : vector<16x128xf32> to vector<16x8xf32>
    %3 = vector.extract_strided_slice %0 {offsets = [0, 16], sizes = [16, 1], strides = [1, 1]} : vector<16x128xf32> to vector<16x1xf32>
    %4 = arith.mulf %1, %1 : vector<16x8xf32>
    %cst = arith.constant dense<0.000000e+00> : vector<16xf32>
    %5 = vector.multi_reduction <add>, %4, %cst [1] : vector<16x8xf32> to vector<16xf32>
    %6 = vector.shape_cast %5 : vector<16xf32> to vector<16x1xf32>
    %c0_1 = arith.constant 0 : index
    %c0_2 = arith.constant 0 : index
    %7 = vector.load %arg2[%c0_1, %c0_2] : memref<8x16xf32, #tpu.memory_space<vmem>>, vector<8x16xf32>
    %cst_3 = arith.constant dense<0.000000e+00> : vector<16x16xf32>
    %8 = tpu.matmul %1, %7, %cst_3 {dimension_numbers = #tpu.dot_dimension_numbers<[1], [0], [0], [1], [0, 0, 1, 1], [], []>} : vector<16x8xf32>, vector<8x16xf32>, vector<16x16xf32> -> vector<16x16xf32>
    %c0_4 = arith.constant 0 : index
    %c0_5 = arith.constant 0 : index
    %9 = vector.load %arg3[%c0_4, %c0_5] : memref<1x16xf32, #tpu.memory_space<vmem>>, vector<1x16xf32>
    %10 = vector.broadcast %6 : vector<16x1xf32> to vector<16x16xf32>
    %11 = vector.broadcast %9 : vector<1x16xf32> to vector<16x16xf32>
    %12 = arith.addf %10, %11 : vector<16x16xf32>
    %cst_6 = arith.constant 2.000000e+00 : f32
    %13 = vector.broadcast %cst_6 : f32 to vector<16x16xf32>
    %14 = arith.mulf %13, %8 : vector<16x16xf32>
    %15 = arith.subf %12, %14 : vector<16x16xf32>
    %cst_7 = arith.constant 0.000000e+00 : f32
    %16 = vector.broadcast %cst_7 : f32 to vector<16x16xf32>
    %17 = arith.maximumf %15, %16 : vector<16x16xf32>
    %c0_8 = arith.constant 0 : index
    %c0_9 = arith.constant 0 : index
    %18 = vector.load %arg4[%c0_8, %c0_9] : memref<1x16xf32, #tpu.memory_space<vmem>>, vector<1x16xf32>
    %19 = vector.broadcast %3 : vector<16x1xf32> to vector<16x16xf32>
    %20 = vector.broadcast %18 : vector<1x16xf32> to vector<16x16xf32>
    %21 = arith.cmpf oeq, %19, %20 : vector<16x16xf32>
    %cst_10 = arith.constant 1.000000e+30 : f32
    %22 = vector.broadcast %cst_10 : f32 to vector<16x16xf32>
    %23 = arith.select %21, %17, %22 : vector<16x16xi1>, vector<16x16xf32>
    %cst_11 = arith.constant 0.000000e+00 : f32
    %24 = vector.broadcast %cst_11 : f32 to vector<16x16xf32>
    %cst_12 = arith.constant dense<0x7F800000> : vector<16xf32>
    %25 = vector.multi_reduction <minimumf>, %23, %cst_12 [1] : vector<16x16xf32> to vector<16xf32>
    %26 = vector.shape_cast %25 : vector<16xf32> to vector<16x1xf32>
    %cst_13 = arith.constant 0.000000e+00 : f32
    %27 = vector.broadcast %cst_13 : f32 to vector<16x1xf32>
    %28 = arith.maximumf %26, %27 : vector<16x1xf32>
    %29 = math.rsqrt %28 : vector<16x1xf32>
    %cst_14 = arith.constant 1.000000e+10 : f32
    %30 = vector.broadcast %cst_14 : f32 to vector<16x1xf32>
    %31 = arith.minimumf %29, %30 : vector<16x1xf32>
    %32 = vector.broadcast %26 : vector<16x1xf32> to vector<16x16xf32>
    %33 = arith.cmpf oeq, %23, %32 : vector<16x16xf32>
    %cst_15 = arith.constant 1.000000e+30 : f32
    %34 = vector.broadcast %cst_15 : f32 to vector<16x1xf32>
    %35 = arith.cmpf olt, %26, %34 : vector<16x1xf32>
    %36 = vector.broadcast %35 : vector<16x1xi1> to vector<16x16xi1>
    %37 = arith.andi %33, %36 : vector<16x16xi1>
    %38 = vector.shape_cast %31 : vector<16x1xf32> to vector<16x1xf32>
    %39 = vector.broadcast %38 : vector<16x1xf32> to vector<16x16xf32>
    %40 = arith.select %37, %39, %24 : vector<16x16xi1>, vector<16x16xf32>
    %cst_16 = arith.constant 1.000000e+30 : f32
    %41 = vector.broadcast %cst_16 : f32 to vector<16x16xf32>
    %42 = arith.select %37, %41, %23 : vector<16x16xi1>, vector<16x16xf32>
    %cst_17 = arith.constant dense<0x7F800000> : vector<16xf32>
    %43 = vector.multi_reduction <minimumf>, %42, %cst_17 [1] : vector<16x16xf32> to vector<16xf32>
    %44 = vector.shape_cast %43 : vector<16xf32> to vector<16x1xf32>
    %cst_18 = arith.constant 0.000000e+00 : f32
    %45 = vector.broadcast %cst_18 : f32 to vector<16x1xf32>
    %46 = arith.maximumf %44, %45 : vector<16x1xf32>
    %47 = math.rsqrt %46 : vector<16x1xf32>
    %cst_19 = arith.constant 1.000000e+10 : f32
    %48 = vector.broadcast %cst_19 : f32 to vector<16x1xf32>
    %49 = arith.minimumf %47, %48 : vector<16x1xf32>
    %50 = vector.broadcast %44 : vector<16x1xf32> to vector<16x16xf32>
    %51 = arith.cmpf oeq, %42, %50 : vector<16x16xf32>
    %cst_20 = arith.constant 1.000000e+30 : f32
    %52 = vector.broadcast %cst_20 : f32 to vector<16x1xf32>
    %53 = arith.cmpf olt, %44, %52 : vector<16x1xf32>
    %54 = vector.broadcast %53 : vector<16x1xi1> to vector<16x16xi1>
    %55 = arith.andi %51, %54 : vector<16x16xi1>
    %56 = vector.shape_cast %49 : vector<16x1xf32> to vector<16x1xf32>
    %57 = vector.broadcast %56 : vector<16x1xf32> to vector<16x16xf32>
    %58 = arith.select %55, %57, %40 : vector<16x16xi1>, vector<16x16xf32>
    %cst_21 = arith.constant 1.000000e+30 : f32
    %59 = vector.broadcast %cst_21 : f32 to vector<16x16xf32>
    %60 = arith.select %55, %59, %42 : vector<16x16xi1>, vector<16x16xf32>
    %cst_22 = arith.constant dense<0x7F800000> : vector<16xf32>
    %61 = vector.multi_reduction <minimumf>, %60, %cst_22 [1] : vector<16x16xf32> to vector<16xf32>
    %62 = vector.shape_cast %61 : vector<16xf32> to vector<16x1xf32>
    %cst_23 = arith.constant 0.000000e+00 : f32
    %63 = vector.broadcast %cst_23 : f32 to vector<16x1xf32>
    %64 = arith.maximumf %62, %63 : vector<16x1xf32>
    %65 = math.rsqrt %64 : vector<16x1xf32>
    %cst_24 = arith.constant 1.000000e+10 : f32
    %66 = vector.broadcast %cst_24 : f32 to vector<16x1xf32>
    %67 = arith.minimumf %65, %66 : vector<16x1xf32>
    %68 = vector.broadcast %62 : vector<16x1xf32> to vector<16x16xf32>
    %69 = arith.cmpf oeq, %60, %68 : vector<16x16xf32>
    %cst_25 = arith.constant 1.000000e+30 : f32
    %70 = vector.broadcast %cst_25 : f32 to vector<16x1xf32>
    %71 = arith.cmpf olt, %62, %70 : vector<16x1xf32>
    %72 = vector.broadcast %71 : vector<16x1xi1> to vector<16x16xi1>
    %73 = arith.andi %69, %72 : vector<16x16xi1>
    %74 = vector.shape_cast %67 : vector<16x1xf32> to vector<16x1xf32>
    %75 = vector.broadcast %74 : vector<16x1xf32> to vector<16x16xf32>
    %76 = arith.select %73, %75, %58 : vector<16x16xi1>, vector<16x16xf32>
    %cst_26 = arith.constant dense<0.000000e+00> : vector<16xf32>
    %77 = vector.multi_reduction <add>, %76, %cst_26 [1] : vector<16x16xf32> to vector<16xf32>
    %78 = vector.shape_cast %77 : vector<16xf32> to vector<16x1xf32>
    %cst_27 = arith.constant 1.000000e-16 : f32
    %79 = vector.broadcast %cst_27 : f32 to vector<16x1xf32>
    %80 = arith.addf %78, %79 : vector<16x1xf32>
    %81 = tpu.reciprocal %80 {approx = true} : vector<16x1xf32> -> vector<16x1xf32>
    %82 = arith.truncf %76 : vector<16x16xf32> to vector<16x16xbf16>
    %c0_28 = arith.constant 0 : index
    %c0_29 = arith.constant 0 : index
    %83 = vector.load %arg1[%c0_28, %c0_29] : memref<16x128xbf16, #tpu.memory_space<vmem>>, vector<16x128xbf16>
    %cst_30 = arith.constant dense<0.000000e+00> : vector<16x128xf32>
    %84 = tpu.matmul %82, %83, %cst_30 {dimension_numbers = #tpu.dot_dimension_numbers<[1], [0], [0], [1], [0, 0, 1, 1], [], []>} : vector<16x16xbf16>, vector<16x128xbf16>, vector<16x128xf32> -> vector<16x128xf32>
    %85 = vector.broadcast %81 : vector<16x1xf32> to vector<16x128xf32>
    %86 = arith.mulf %84, %85 : vector<16x128xf32>
    %c0_31 = arith.constant 0 : index
    %c0_32 = arith.constant 0 : index
    %87 = vector.load %arg6[%c0_31, %c0_32] : memref<8x128xf32, #tpu.memory_space<vmem>>, vector<8x128xf32>
    %cst_33 = arith.constant dense<0.000000e+00> : vector<16x128xf32>
    %88 = tpu.matmul %2, %87, %cst_33 {dimension_numbers = #tpu.dot_dimension_numbers<[1], [0], [0], [1], [0, 0, 1, 1], [], []>} : vector<16x8xf32>, vector<8x128xf32>, vector<16x128xf32> -> vector<16x128xf32>
    %89 = arith.addf %86, %88 : vector<16x128xf32>
    %c0_34 = arith.constant 0 : index
    %c0_35 = arith.constant 0 : index
    %90 = vector.load %arg7[%c0_34, %c0_35] : memref<8x128xf32, #tpu.memory_space<vmem>>, vector<8x128xf32>
    %cst_36 = arith.constant dense<0.000000e+00> : vector<16x128xf32>
    %91 = tpu.matmul %1, %90, %cst_36 {dimension_numbers = #tpu.dot_dimension_numbers<[1], [0], [0], [1], [0, 0, 1, 1], [], []>} : vector<16x8xf32>, vector<8x128xf32>, vector<16x128xf32> -> vector<16x128xf32>
    %92 = arith.addf %89, %91 : vector<16x128xf32>
    %c0_37 = arith.constant 0 : index
    %c0_38 = arith.constant 0 : index
    %93 = vector.load %arg8[%c0_37, %c0_38] : memref<1x128xf32, #tpu.memory_space<vmem>>, vector<1x128xf32>
    %94 = vector.broadcast %93 : vector<1x128xf32> to vector<16x128xf32>
    %95 = arith.addf %92, %94 : vector<16x128xf32>
    %cst_39 = arith.constant 0.000000e+00 : f32
    %96 = vector.broadcast %cst_39 : f32 to vector<16x128xf32>
    %97 = arith.maximumf %95, %96 : vector<16x128xf32>
    %98 = arith.truncf %97 : vector<16x128xf32> to vector<16x128xbf16>
    %c0_40 = arith.constant 0 : index
    %c0_41 = arith.constant 0 : index
    %99 = vector.load %arg9[%c0_40, %c0_41] : memref<128x128xbf16, #tpu.memory_space<vmem>>, vector<128x128xbf16>
    %cst_42 = arith.constant dense<0.000000e+00> : vector<16x128xf32>
    %100 = tpu.matmul %98, %99, %cst_42 {dimension_numbers = #tpu.dot_dimension_numbers<[1], [0], [0], [1], [0, 0, 1, 1], [], []>} : vector<16x128xbf16>, vector<128x128xbf16>, vector<16x128xf32> -> vector<16x128xf32>
    %c0_43 = arith.constant 0 : index
    %c0_44 = arith.constant 0 : index
    %101 = vector.load %arg10[%c0_43, %c0_44] : memref<1x128xf32, #tpu.memory_space<vmem>>, vector<1x128xf32>
    %102 = vector.broadcast %101 : vector<1x128xf32> to vector<16x128xf32>
    %103 = arith.addf %100, %102 : vector<16x128xf32>
    %cst_45 = arith.constant 0.000000e+00 : f32
    %104 = vector.broadcast %cst_45 : f32 to vector<16x128xf32>
    %105 = arith.maximumf %103, %104 : vector<16x128xf32>
    %c0_46 = arith.constant 0 : index
    %c0_47 = arith.constant 0 : index
    %106 = vector.load %arg11[%c0_46, %c0_47] : memref<16x128xf32, #tpu.memory_space<vmem>>, vector<16x128xf32>
    tpu.vector_store %arg11[%c0_46, %c0_47], %105 {strides = array<i32>} : memref<16x128xf32, #tpu.memory_space<vmem>>, vector<16x128xf32>,
    return
  }
  func.func @transform_0(%arg0: i32) -> (i32, i32) {
    %c0_i32 = arith.constant 0 : i32
    %c0_i32_0 = arith.constant 0 : i32
    %c0_i32_1 = arith.constant 0 : i32
    return %c0_i32, %c0_i32_0 : i32, i32
  }
  func.func @transform_1(%arg0: i32) -> (i32, i32) {
    %c0_i32 = arith.constant 0 : i32
    %c0_i32_0 = arith.constant 0 : i32
    %c0_i32_1 = arith.constant 0 : i32
    return %c0_i32, %c0_i32_0 : i32, i32
  }
  func.func @transform_2(%arg0: i32) -> (i32, i32) {
    %c0_i32 = arith.constant 0 : i32
    %c0_i32_0 = arith.constant 0 : i32
    %c0_i32_1 = arith.constant 0 : i32
    return %c0_i32, %c0_i32_0 : i32, i32
  }
  func.func @transform_3(%arg0: i32) -> (i32, i32) {
    %c0_i32 = arith.constant 0 : i32
    %c0_i32_0 = arith.constant 0 : i32
    %c0_i32_1 = arith.constant 0 : i32
    return %c0_i32, %c0_i32_0 : i32, i32
  }
  func.func @transform_4(%arg0: i32) -> (i32, i32) {
    %c0_i32 = arith.constant 0 : i32
    %c0_i32_0 = arith.constant 0 : i32
    return %arg0, %c0_i32 : i32, i32
  }
  func.func @transform_5(%arg0: i32) -> (i32, i32) {
    %c0_i32 = arith.constant 0 : i32
    %c0_i32_0 = arith.constant 0 : i32
    %c0_i32_1 = arith.constant 0 : i32
    return %c0_i32, %c0_i32_0 : i32, i32
  }
  func.func @transform_6(%arg0: i32) -> (i32, i32) {
    %c0_i32 = arith.constant 0 : i32
    %c0_i32_0 = arith.constant 0 : i32
    %c0_i32_1 = arith.constant 0 : i32
    return %c0_i32, %c0_i32_0 : i32, i32
  }
  func.func @transform_7(%arg0: i32) -> (i32, i32) {
    %c0_i32 = arith.constant 0 : i32
    %c0_i32_0 = arith.constant 0 : i32
    %c0_i32_1 = arith.constant 0 : i32
    return %c0_i32, %c0_i32_0 : i32, i32
  }
  func.func @transform_8(%arg0: i32) -> (i32, i32) {
    %c0_i32 = arith.constant 0 : i32
    %c0_i32_0 = arith.constant 0 : i32
    %c0_i32_1 = arith.constant 0 : i32
    return %c0_i32, %c0_i32_0 : i32, i32
  }
  func.func @transform_9(%arg0: i32) -> (i32, i32) {
    %c0_i32 = arith.constant 0 : i32
    %c0_i32_0 = arith.constant 0 : i32
    %c0_i32_1 = arith.constant 0 : i32
    return %c0_i32, %c0_i32_0 : i32, i32
  }
  func.func @transform_10(%arg0: i32) -> (i32, i32) {
    %c0_i32 = arith.constant 0 : i32
    %c0_i32_0 = arith.constant 0 : i32
    return %arg0, %c0_i32 : i32, i32
  }
}

</mosaic_0001>

<llo_original>
// kernel: tpu_custom_call.1
$region0: #{tpu_custom_call.1}
  #allocation0 [shape = 'u32[]', space=smem, size = 0x4, offset = 0x4, fixed_abs, tag = 'smem constant byte address 0x4 - core index']
  #allocation1 [shape = 'u32[144,128]{1,0:T(1,128)}', space=vmem, size = 0x12000, scoped, tag = 'internal scratch']
  %s0 = inlined_call_operand.hbm [shape: bf16[16,128], index: 0, kind: input, shape index: {}]
  %s1 = inlined_call_operand.hbm [shape: f32[8,16], index: 1, kind: input, shape index: {}]
  %s2 = inlined_call_operand.vmem [shape: f32[1,16], index: 2, kind: input, shape index: {}]
  %s3 = inlined_call_operand.vmem [shape: f32[1,16], index: 3, kind: input, shape index: {}]
  %s4 = inlined_call_operand.hbm [shape: f32[32,128], index: 4, kind: input, shape index: {}]
  %s5 = inlined_call_operand.vmem [shape: f32[8,128], index: 5, kind: input, shape index: {}]
  %s6 = inlined_call_operand.vmem [shape: f32[8,128], index: 6, kind: input, shape index: {}]
  %s7 = inlined_call_operand.vmem [shape: f32[1,128], index: 7, kind: input, shape index: {}]
  %s8 = inlined_call_operand.hbm [shape: bf16[128,128], index: 8, kind: input, shape index: {}]
  %s9 = inlined_call_operand.vmem [shape: f32[1,128], index: 9, kind: input, shape index: {}]
  %s10 = inlined_call_operand.hbm [shape: f32[32,128], index: 10, kind: output, shape index: {}]
  %s11 = sld [smem:[#allocation0]]
  $region89: #{tpu_custom_call.1} parent=0
    _
  %s13 = ssub.s32 1, %s11
  %s14 = scalar_select 0, %s13, %s11
  $region1: #{tpu_custom_call.1} parent=0
    #allocation2 [shape = 'u8[4096]{0}', space=vmem, size = 0x1000, scoped, tag = 'input window, operand 0, single buffered']
    #allocation3 [shape = 's32[2]{0}', space=sflag, size = 0x8, scoped, tag = 'scoped memory for tpu_custom_call.1']
    #allocation4 [shape = 's32[2]{0}', space=sflag, size = 0x8, scoped, tag = 'scoped memory for tpu_custom_call.1']
    #allocation5 [shape = 'u8[4096]{0}', space=vmem, size = 0x1000, scoped, tag = 'input window, operand 1, single buffered']
    #allocation6 [shape = 's32[1]{0}', space=sflag, size = 0x4, scoped, tag = 'scoped memory for tpu_custom_call.1']
    #allocation7 [shape = 'u8[16384]{0}', space=vmem, size = 0x4000, scoped, tag = 'input window, operand 4']
    #allocation8 [shape = 'u8[32768]{0}', space=vmem, size = 0x8000, scoped, tag = 'input window, operand 8, single buffered']
    #allocation9 [shape = 'u8[16384]{0}', space=vmem, size = 0x4000, scoped, tag = 'output window, operand 0']
    %15 = vsyncpa [#allocation3], 0
    %16 = vsyncpa [#allocation6], 0
    %17 = vsyncpa [#allocation4], 0
    %s18 = scalar_lea.sflag [#allocation4], 1
    %19 = vsyncpa %s18, 0
    loop: start=0, step=1, limit=4
    $region2: #{tpu_custom_call.1} parent=1 // loop_pre_header
      _
    $region3: #{tpu_custom_call.1} parent=1 // loop_header
      %s21 = sphi 0, %s25
      %p22 = scmp.ge.s32.totalorder %s21, 4
      %s29 = sphi 0, %s29
      %s31 = sphi 0, %s29
      %s32 = sphi 0, %s31
      %s46 = sphi 0, %s32
      %s50 = sphi 0, %s50
      %s52 = sphi 0, %s50
      %s53 = sphi 0, %s52
      %s67 = sphi 0, %s53
      %s71 = sphi 0, %s71
      %s73 = sphi 0, %s71
      %s74 = sphi 0, %s73
      %s88 = sphi 0, %s74
      %s92 = sphi 0, %s92
      %s94 = sphi 0, %s92
      %s95 = sphi 0, %s94
      %s109 = sphi 0, %s95
      %s115 = sphi 0, %s117
      %s118 = sphi 0, %s115
      %s119 = sphi 0, %s118
      %s135 = sphi 0, %s119
      %s139 = sphi 0, %s139
      %s141 = sphi 0, %s139
      %s142 = sphi 0, %s141
      %s156 = sphi 0, %s142
      %s160 = sphi 0, %s160
      %s162 = sphi 0, %s160
      %s163 = sphi 0, %s162
      %s177 = sphi 0, %s163
      %s181 = sphi 0, %s181
      %s183 = sphi 0, %s181
      %s184 = sphi 0, %s183
      %s198 = sphi 0, %s184
      %s202 = sphi 0, %s202
      %s204 = sphi 0, %s202
      %s205 = sphi 0, %s204
      %s219 = sphi 0, %s205
      %s223 = sphi 0, %s223
      %s225 = sphi 0, %s223
      %s226 = sphi 0, %s225
      %s240 = sphi 0, %s226
      %s246 = sphi 0, %s248
      %s249 = sphi 0, %s246
      %s250 = sphi 0, %s249
      %s266 = sphi 0, %s250
    $region4: #{tpu_custom_call.1} parent=1 // loop_header_branch
      %24 = sbr.rel (%p22) target = $region8
    $region5: #{tpu_custom_call.1} parent=1 // loop_body
      %s26 = ssub.s32 %s21, 1
      %s27 = ssub.s32 %s21, 2
      %s28 = sadd.s32 %s21, 1
      %s30 = sadd.s32 %s29, 1
      %p33 = scmp.eq.s32.totalorder %s21, 1
      %p34 = scmp.ne.s32.totalorder %s29, %s31
      %p35 = scmp.eq.s32.totalorder %s21, 0
      %p36 = por %p34, %p35
      %p37 = scmp.ne.s32.totalorder %s29, %s31
      %p38 = scmp.eq.s32.totalorder %s26, 1
      %p39 = por %p37, %p38
      %p40 = scmp.ne.s32.totalorder %s31, %s32
      %p41 = scmp.eq.s32.totalorder %s26, 0
      %p42 = por %p40, %p41
      %p43 = scmp.ne.s32.totalorder %s31, %s32
      %p44 = scmp.eq.s32.totalorder %s27, 1
      %p45 = por %p43, %p44
      %p47 = scmp.ne.s32.totalorder %s32, %s46
      %p48 = scmp.eq.s32.totalorder %s27, 0
      %p49 = por %p47, %p48
      %s51 = sadd.s32 %s50, 1
      %p54 = scmp.eq.s32.totalorder %s21, 1
      %p55 = scmp.ne.s32.totalorder %s50, %s52
      %p56 = scmp.eq.s32.totalorder %s21, 0
      %p57 = por %p55, %p56
      %p58 = scmp.ne.s32.totalorder %s50, %s52
      %p59 = scmp.eq.s32.totalorder %s26, 1
      %p60 = por %p58, %p59
      %p61 = scmp.ne.s32.totalorder %s52, %s53
      %p62 = scmp.eq.s32.totalorder %s26, 0
      %p63 = por %p61, %p62
      %p64 = scmp.ne.s32.totalorder %s52, %s53
      %p65 = scmp.eq.s32.totalorder %s27, 1
      %p66 = por %p64, %p65
      %p68 = scmp.ne.s32.totalorder %s53, %s67
      %p69 = scmp.eq.s32.totalorder %s27, 0
      %p70 = por %p68, %p69
      %s72 = sadd.s32 %s71, 1
      %p75 = scmp.eq.s32.totalorder %s21, 1
      %p76 = scmp.ne.s32.totalorder %s71, %s73
      %p77 = scmp.eq.s32.totalorder %s21, 0
      %p78 = por %p76, %p77
      %p79 = scmp.ne.s32.totalorder %s71, %s73
      %p80 = scmp.eq.s32.totalorder %s26, 1
      %p81 = por %p79, %p80
      %p82 = scmp.ne.s32.totalorder %s73, %s74
      %p83 = scmp.eq.s32.totalorder %s26, 0
      %p84 = por %p82, %p83
      %p85 = scmp.ne.s32.totalorder %s73, %s74
      %p86 = scmp.eq.s32.totalorder %s27, 1
      %p87 = por %p85, %p86
      %p89 = scmp.ne.s32.totalorder %s74, %s88
      %p90 = scmp.eq.s32.totalorder %s27, 0
      %p91 = por %p89, %p90
      %s93 = sadd.s32 %s92, 1
      %p96 = scmp.eq.s32.totalorder %s21, 1
      %p97 = scmp.ne.s32.totalorder %s92, %s94
      %p98 = scmp.eq.s32.totalorder %s21, 0
      %p99 = por %p97, %p98
      %p100 = scmp.ne.s32.totalorder %s92, %s94
      %p101 = scmp.eq.s32.totalorder %s26, 1
      %p102 = por %p100, %p101
      %p103 = scmp.ne.s32.totalorder %s94, %s95
      %p104 = scmp.eq.s32.totalorder %s26, 0
      %p105 = por %p103, %p104
      %p106 = scmp.ne.s32.totalorder %s94, %s95
      %p107 = scmp.eq.s32.totalorder %s27, 1
      %p108 = por %p106, %p107
      %p110 = scmp.ne.s32.totalorder %s95, %s109
      %p111 = scmp.eq.s32.totalorder %s27, 0
      %p112 = por %p110, %p111
      %s113 = ssub.s32 %s21, %s28
      %p114 = scmp.eq.s32.totalorder %s113, 0
      %s116 = sadd.s32 %s115, 1
      %s117 = scalar_select %p114, %s115, %s116
      %p120 = pneg %p114
      %p121 = scmp.eq.s32.totalorder %s21, 1
      %p122 = por %p120, %p121
      %p123 = scmp.ne.s32.totalorder %s115, %s118
      %p124 = scmp.eq.s32.totalorder %s21, 0
      %p125 = por %p123, %p124
      %p126 = scmp.ne.s32.totalorder %s115, %s118
      %p127 = scmp.eq.s32.totalorder %s26, 1
      %p128 = por %p126, %p127
      %p129 = scmp.ne.s32.totalorder %s118, %s119
      %p130 = scmp.eq.s32.totalorder %s26, 0
      %p131 = por %p129, %p130
      %p132 = scmp.ne.s32.totalorder %s118, %s119
      %p133 = scmp.eq.s32.totalorder %s27, 1
      %p134 = por %p132, %p133
      %p136 = scmp.ne.s32.totalorder %s119, %s135
      %p137 = scmp.eq.s32.totalorder %s27, 0
      %p138 = por %p136, %p137
      %s140 = sadd.s32 %s139, 1
      %p143 = scmp.eq.s32.totalorder %s21, 1
      %p144 = scmp.ne.s32.totalorder %s139, %s141
      %p145 = scmp.eq.s32.totalorder %s21, 0
      %p146 = por %p144, %p145
      %p147 = scmp.ne.s32.totalorder %s139, %s141
      %p148 = scmp.eq.s32.totalorder %s26, 1
      %p149 = por %p147, %p148
      %p150 = scmp.ne.s32.totalorder %s141, %s142
      %p151 = scmp.eq.s32.totalorder %s26, 0
      %p152 = por %p150, %p151
      %p153 = scmp.ne.s32.totalorder %s141, %s142
      %p154 = scmp.eq.s32.totalorder %s27, 1
      %p155 = por %p153, %p154
      %p157 = scmp.ne.s32.totalorder %s142, %s156
      %p158 = scmp.eq.s32.totalorder %s27, 0
      %p159 = por %p157, %p158
      %s161 = sadd.s32 %s160, 1
      %p164 = scmp.eq.s32.totalorder %s21, 1
      %p165 = scmp.ne.s32.totalorder %s160, %s162
      %p166 = scmp.eq.s32.totalorder %s21, 0
      %p167 = por %p165, %p166
      %p168 = scmp.ne.s32.totalorder %s160, %s162
      %p169 = scmp.eq.s32.totalorder %s26, 1
      %p170 = por %p168, %p169
      %p171 = scmp.ne.s32.totalorder %s162, %s163
      %p172 = scmp.eq.s32.totalorder %s26, 0
      %p173 = por %p171, %p172
      %p174 = scmp.ne.s32.totalorder %s162, %s163
      %p175 = scmp.eq.s32.totalorder %s27, 1
      %p176 = por %p174, %p175
      %p178 = scmp.ne.s32.totalorder %s163, %s177
      %p179 = scmp.eq.s32.totalorder %s27, 0
      %p180 = por %p178, %p179
      %s182 = sadd.s32 %s181, 1
      %p185 = scmp.eq.s32.totalorder %s21, 1
      %p186 = scmp.ne.s32.totalorder %s181, %s183
      %p187 = scmp.eq.s32.totalorder %s21, 0
      %p188 = por %p186, %p187
      %p189 = scmp.ne.s32.totalorder %s181, %s183
      %p190 = scmp.eq.s32.totalorder %s26, 1
      %p191 = por %p189, %p190
      %p192 = scmp.ne.s32.totalorder %s183, %s184
      %p193 = scmp.eq.s32.totalorder %s26, 0
      %p194 = por %p192, %p193
      %p195 = scmp.ne.s32.totalorder %s183, %s184
      %p196 = scmp.eq.s32.totalorder %s27, 1
      %p197 = por %p195, %p196
      %p199 = scmp.ne.s32.totalorder %s184, %s198
      %p200 = scmp.eq.s32.totalorder %s27, 0
      %p201 = por %p199, %p200
      %s203 = sadd.s32 %s202, 1
      %p206 = scmp.eq.s32.totalorder %s21, 1
      %p207 = scmp.ne.s32.totalorder %s202, %s204
      %p208 = scmp.eq.s32.totalorder %s21, 0
      %p209 = por %p207, %p208
      %p210 = scmp.ne.s32.totalorder %s202, %s204
      %p211 = scmp.eq.s32.totalorder %s26, 1
      %p212 = por %p210, %p211
      %p213 = scmp.ne.s32.totalorder %s204, %s205
      %p214 = scmp.eq.s32.totalorder %s26, 0
      %p215 = por %p213, %p214
      %p216 = scmp.ne.s32.totalorder %s204, %s205
      %p217 = scmp.eq.s32.totalorder %s27, 1
      %p218 = por %p216, %p217
      %p220 = scmp.ne.s32.totalorder %s205, %s219
      %p221 = scmp.eq.s32.totalorder %s27, 0
      %p222 = por %p220, %p221
      %s224 = sadd.s32 %s223, 1
      %p227 = scmp.eq.s32.totalorder %s21, 1
      %p228 = scmp.ne.s32.totalorder %s223, %s225
      %p229 = scmp.eq.s32.totalorder %s21, 0
      %p230 = por %p228, %p229
      %p231 = scmp.ne.s32.totalorder %s223, %s225
      %p232 = scmp.eq.s32.totalorder %s26, 1
      %p233 = por %p231, %p232
      %p234 = scmp.ne.s32.totalorder %s225, %s226
      %p235 = scmp.eq.s32.totalorder %s26, 0
      %p236 = por %p234, %p235
      %p237 = scmp.ne.s32.totalorder %s225, %s226
      %p238 = scmp.eq.s32.totalorder %s27, 1
      %p239 = por %p237, %p238
      %p241 = scmp.ne.s32.totalorder %s226, %s240
      %p242 = scmp.eq.s32.totalorder %s27, 0
      %p243 = por %p241, %p242
      %s244 = ssub.s32 %s21, %s28
      %p245 = scmp.eq.s32.totalorder %s244, 0
      %s247 = sadd.s32 %s246, 1
      %s248 = scalar_select %p245, %s246, %s247
      %p251 = pneg %p245
      %p252 = scmp.eq.s32.totalorder %s21, 1
      %p253 = por %p251, %p252
      %p254 = scmp.ne.s32.totalorder %s246, %s249
      %p255 = scmp.eq.s32.totalorder %s21, 0
      %p256 = por %p254, %p255
      %p257 = scmp.ne.s32.totalorder %s246, %s249
      %p258 = scmp.eq.s32.totalorder %s26, 1
      %p259 = por %p257, %p258
      %p260 = scmp.ne.s32.totalorder %s249, %s250
      %p261 = scmp.eq.s32.totalorder %s26, 0
      %p262 = por %p260, %p261
      %p263 = scmp.ne.s32.totalorder %s249, %s250
      %p264 = scmp.eq.s32.totalorder %s27, 1
      %p265 = por %p263, %p264
      %p267 = scmp.ne.s32.totalorder %s250, %s266
      %p268 = scmp.eq.s32.totalorder %s27, 0
      %p269 = por %p267, %p268
      %p270 = scmp.le.s32.totalorder 1, %s21
      %p271 = scmp.lt.s32.totalorder %s21, 3
      %p272 = pnand %p270, %p271
      %p273 = pneg %p272
      // Predicated region
      $region9: #{tpu_custom_call.1} parent=5 // pred_check
        _
      $region10: #{tpu_custom_call.1} parent=5 // pred_check_branch
        %275 = sbr.rel (%p272) target = $region12
      $region11: #{tpu_custom_call.1} parent=5 // pred_region
        %s276 = ssub.s32 %s21, 1
        // Predicated region
        $region13: #{tpu_custom_call.1} parent=11 // pred_check
          %p277 = pneg %p42
        $region14: #{tpu_custom_call.1} parent=11 // pred_check_branch
          %279 = sbr.rel (%p277) target = $region16
        $region15: #{tpu_custom_call.1} parent=11 // pred_region
          %s281 = ssub.s32 128, 128
          %282 = vsyncadd [#allocation3], %s281
          %s283 = sshll.u32 [#allocation2], 4
          %s284 = int_to_ptr.vmem [resolvable:$true] %s283
          %289 = dma.hbm_to_vmem [thread:$0]  %s0, 128, %s284, [#allocation3], 64, 64, 4
        $region16: #{tpu_custom_call.1} parent=11 // pred_fallthru
          _
        // Predicated region
        $region17: #{tpu_custom_call.1} parent=11 // pred_check
          %p290 = pneg %p63
        $region18: #{tpu_custom_call.1} parent=11 // pred_check_branch
          %292 = sbr.rel (%p290) target = $region20
        $region19: #{tpu_custom_call.1} parent=11 // pred_region
          %s294 = ssub.s32 128, 128
          %295 = vsyncadd [#allocation6], %s294
          %s297 = sshll.u32 [#allocation5], 4
          %s298 = int_to_ptr.vmem [resolvable:$true] %s297
          %300 = dma.hbm_to_vmem [thread:$0]  %s1, 128, %s298, [#allocation6]
        $region20: #{tpu_custom_call.1} parent=11 // pred_fallthru
          _
        // Predicated region
        $region21: #{tpu_custom_call.1} parent=11 // pred_check
          %p301 = pneg %p84
        $region22: #{tpu_custom_call.1} parent=11 // pred_check_branch
          %303 = sbr.rel (%p301) target = $region24
        $region23: #{tpu_custom_call.1} parent=11 // pred_region
          _
        $region24: #{tpu_custom_call.1} parent=11 // pred_fallthru
          _
        // Predicated region
        $region25: #{tpu_custom_call.1} parent=11 // pred_check
          %p304 = pneg %p105
        $region26: #{tpu_custom_call.1} parent=11 // pred_check_branch
          %306 = sbr.rel (%p304) target = $region28
        $region27: #{tpu_custom_call.1} parent=11 // pred_region
          _
        $region28: #{tpu_custom_call.1} parent=11 // pred_fallthru
          _
        // Predicated region
        $region29: #{tpu_custom_call.1} parent=11 // pred_check
          %p307 = pneg %p152
        $region30: #{tpu_custom_call.1} parent=11 // pred_check_branch
          %309 = sbr.rel (%p307) target = $region32
        $region31: #{tpu_custom_call.1} parent=11 // pred_region
          _
        $region32: #{tpu_custom_call.1} parent=11 // pred_fallthru
          _
        // Predicated region
        $region33: #{tpu_custom_call.1} parent=11 // pred_check
          %p310 = pneg %p173
        $region34: #{tpu_custom_call.1} parent=11 // pred_check_branch
          %312 = sbr.rel (%p310) target = $region36
        $region35: #{tpu_custom_call.1} parent=11 // pred_region
          _
        $region36: #{tpu_custom_call.1} parent=11 // pred_fallthru
          _
        // Predicated region
        $region37: #{tpu_custom_call.1} parent=11 // pred_check
          %p313 = pneg %p194
        $region38: #{tpu_custom_call.1} parent=11 // pred_check_branch
          %315 = sbr.rel (%p313) target = $region40
        $region39: #{tpu_custom_call.1} parent=11 // pred_region
          _
        $region40: #{tpu_custom_call.1} parent=11 // pred_fallthru
          _
        // Predicated region
        $region41: #{tpu_custom_call.1} parent=11 // pred_check
          %p316 = pneg %p215
        $region42: #{tpu_custom_call.1} parent=11 // pred_check_branch
          %318 = sbr.rel (%p316) target = $region44
        $region43: #{tpu_custom_call.1} parent=11 // pred_region
          %s320 = ssub.s32 1024, 1024
          %321 = vsyncadd [#allocation6], %s320
          %s322 = sshll.u32 [#allocation8], 4
          %s323 = int_to_ptr.vmem [resolvable:$true] %s322
          %328 = dma.hbm_to_vmem [thread:$0]  %s8, 1024, %s323, [#allocation6], 64, 64, 4
        $region44: #{tpu_custom_call.1} parent=11 // pred_fallthru
          _
        // Predicated region
        $region45: #{tpu_custom_call.1} parent=11 // pred_check
          %p329 = pneg %p236
        $region46: #{tpu_custom_call.1} parent=11 // pred_check_branch
          %331 = sbr.rel (%p329) target = $region48
        $region47: #{tpu_custom_call.1} parent=11 // pred_region
          _
        $region48: #{tpu_custom_call.1} parent=11 // pred_fallthru
          _
      $region12: #{tpu_custom_call.1} parent=5 // pred_fallthru
        _
      %p332 = scmp.lt.s32.totalorder %s21, 2
      // Predicated region
      $region49: #{tpu_custom_call.1} parent=5 // pred_check
        %p333 = pneg %p332
      $region50: #{tpu_custom_call.1} parent=5 // pred_check_branch
        %335 = sbr.rel (%p333) target = $region52
      $region51: #{tpu_custom_call.1} parent=5 // pred_region
        // Predicated region
        $region53: #{tpu_custom_call.1} parent=51 // pred_check
          %p336 = pneg %p125
        $region54: #{tpu_custom_call.1} parent=51 // pred_check_branch
          %338 = sbr.rel (%p336) target = $region56
        $region55: #{tpu_custom_call.1} parent=51 // pred_region
          %s339 = sand.u32 %s21, 1
          %s340 = scalar_lea.sflag [#allocation3], %s339
          %s341 = sand.u32 %s115, 1
          %s342 = smul.addr %s341, 16
          %s343 = scalar_lea.vmem [#allocation7], %s342
          %s344 = smul.u32 2, %s21
          %s346 = ssub.s32 256, 256
          %347 = vsyncadd %s340, %s346
          %s348 = smul.addr %s344, 128
          %s349 = scalar_lea.hbm %s4, %s348
          %s350 = sshll.u32 %s343, 4
          %s351 = int_to_ptr.vmem [resolvable:$true] %s350
          %356 = dma.hbm_to_vmem [thread:$0]  %s349, 256, %s351, %s340, 128, 128, 8
        $region56: #{tpu_custom_call.1} parent=51 // pred_fallthru
          _
      $region52: #{tpu_custom_call.1} parent=5 // pred_fallthru
        _
      %p357 = scmp.le.s32.totalorder 1, %s21
      %p358 = scmp.lt.s32.totalorder %s21, 3
      %p359 = pnand %p357, %p358
      %p360 = pneg %p359
      // Predicated region
      $region57: #{tpu_custom_call.1} parent=5 // pred_check
        _
      $region58: #{tpu_custom_call.1} parent=5 // pred_check_branch
        %362 = sbr.rel (%p359) target = $region60
      $region59: #{tpu_custom_call.1} parent=5 // pred_region
        %s363 = ssub.s32 %s21, 1
        // Predicated region
        $region61: #{tpu_custom_call.1} parent=59 // pred_check
          %p364 = pneg %p42
        $region62: #{tpu_custom_call.1} parent=59 // pred_check_branch
          %366 = sbr.rel (%p364) target = $region64
        $region63: #{tpu_custom_call.1} parent=59 // pred_region
          %367 = dma.done [#allocation3], 128
        $region64: #{tpu_custom_call.1} parent=59 // pred_fallthru
          _
        // Predicated region
        $region65: #{tpu_custom_call.1} parent=59 // pred_check
          %p368 = pneg %p63
        $region66: #{tpu_custom_call.1} parent=59 // pred_check_branch
          %370 = sbr.rel (%p368) target = $region68
        $region67: #{tpu_custom_call.1} parent=59 // pred_region
          %371 = dma.done [#allocation6], 128
        $region68: #{tpu_custom_call.1} parent=59 // pred_fallthru
          _
        %s372 = sand.u32 %s26, 1
        %s373 = scalar_lea.sflag [#allocation3], %s372
        %s374 = sand.u32 %s118, 1
        %s375 = smul.addr %s374, 16
        %s376 = scalar_lea.vmem [#allocation7], %s375
        // Predicated region
        $region69: #{tpu_custom_call.1} parent=59 // pred_check
          %p377 = pneg %p131
        $region70: #{tpu_custom_call.1} parent=59 // pred_check_branch
          %379 = sbr.rel (%p377) target = $region72
        $region71: #{tpu_custom_call.1} parent=59 // pred_region
          %380 = dma.done %s373, 256
        $region72: #{tpu_custom_call.1} parent=59 // pred_fallthru
          _
        // Predicated region
        $region73: #{tpu_custom_call.1} parent=59 // pred_check
          %p381 = pneg %p215
        $region74: #{tpu_custom_call.1} parent=59 // pred_check_branch
          %383 = sbr.rel (%p381) target = $region76
        $region75: #{tpu_custom_call.1} parent=59 // pred_region
          %384 = dma.done [#allocation6], 1024
        $region76: #{tpu_custom_call.1} parent=59 // pred_fallthru
          _
        %p385 = pneg %p42
        %p386 = pneg %p39
        %p387 = pneg %p63
        %p388 = pneg %p60
        %p389 = pneg %p84
        %p390 = pneg %p81
        %p391 = pneg %p105
        %p392 = pneg %p102
        %s393 = sand.u32 %s26, 1
        %s394 = scalar_lea.sflag [#allocation3], %s393
        %s395 = sand.u32 %s118, 1
        %s396 = smul.addr %s395, 16
        %s397 = scalar_lea.vmem [#allocation7], %s396
        %p398 = pneg %p131
        %p399 = pneg %p128
        %p400 = pneg %p152
        %p401 = pneg %p149
        %p402 = pneg %p173
        %p403 = pneg %p170
        %p404 = pneg %p194
        %p405 = pneg %p191
        %p406 = pneg %p215
        %p407 = pneg %p212
        %p408 = pneg %p236
        %p409 = pneg %p233
        %p410 = pneg %p262
        %p411 = pneg %p259
        %s412 = sand.u32 %s249, 1
        %s413 = scalar_lea.sflag [#allocation4], %s412
        %s414 = sand.u32 %s249, 1
        %s415 = smul.addr %s414, 16
        %s416 = scalar_lea.vmem [#allocation9], %s415
        %s417 = smul.u32 2, %s26
        %s418 = smul.u32 2, %s26
        %v420 = vld [vmem:[%s376] sm:$0xff]
        %v421 = vld [vmem:[%s376 + $0x8] sm:$0xff]
        %v422 = vmul.f32 %v420, %v420
        %v423 = vmul.f32 %v421, %v421
        %vm424 = vcmask 64512
        %v425 = vsel %vm424, %v422, 0.0
        %426 = vadd.xlane.f32.xlu0 %v425
        %v427 = vpop.xlane.xlu0 %426
        %v428 = vsel %vm424, %v423, 0.0
        %429 = vadd.xlane.f32.xlu0 %v428
        %v430 = vpop.xlane.xlu0 %429
        %v431 = vld [vmem:[#allocation5] sm:$0xff]
        %v433 = vsel %vm424, %v420, 0
        %v436 = vsel %vm424, %v421, 0
        %438 = vmatprep.subr.mxu0 0.0
        %439 = vmatpush1.msra.mxu0 %v431
        %440 = vmatprep.subr.mxu0 0.0
        %441 = vmatpush1.msra.mxu0 0.0
        %442 = vmatprep.subr.mxu0 0.0
        %443 = vmatpush1.msra.mxu0 0.0
        %444 = vmatprep.subr.mxu0 0.0
        %445 = vmatpush1.msra.mxu0 0.0
        %446 = vmatprep.subr.mxu0 0.0
        %447 = vmatpush1.msra.mxu0 0.0
        %448 = vmatprep.subr.mxu0 0.0
        %449 = vmatpush1.msra.mxu0 0.0
        %450 = vmatprep.subr.mxu0 0.0
        %451 = vmatpush1.msra.mxu0 0.0
        %452 = vmatprep.subr.mxu0 0.0
        %453 = vmatpush1.msra.mxu0 0.0
        %454 = vmatprep.subr.mxu0 0.0
        %455 = vmatpush1.msra.mxu0 0.0
        %456 = vmatprep.subr.mxu0 0.0
        %457 = vmatpush1.msra.mxu0 0.0
        %458 = vmatprep.subr.mxu0 0.0
        %459 = vmatpush1.msra.mxu0 0.0
        %460 = vmatprep.subr.mxu0 0.0
        %461 = vmatpush1.msra.mxu0 0.0
        %462 = vmatprep.subr.mxu0 0.0
        %463 = vmatpush1.msra.mxu0 0.0
        %464 = vmatprep.subr.mxu0 0.0
        %465 = vmatpush1.msra.mxu0 0.0
        %466 = vmatprep.subr.mxu0 0.0
        %467 = vmatpush1.msra.mxu0 0.0
        %468 = vmatprep.subr.mxu0 0.0
        %469 = vmatpush1.msra.mxu0 0.0
        %470 = vmatprep.subr.mxu0 0.0
        %471 = vmatpush1.msra.mxu0 0.0
        %472 = vmatprep.subr.mxu0 0.0
        %473 = vmatpush1.msra.mxu0 0.0
        %474 = vmatprep.subr.mxu0 0.0
        %475 = vmatpush1.msra.mxu0 0.0
        %476 = vmatprep.subr.mxu0 0.0
        %477 = vmatpush1.msra.mxu0 0.0
        %478 = vmatprep.subr.mxu0 0.0
        %479 = vmatpush1.msra.mxu0 0.0
        %480 = vmatprep.subr.mxu0 0.0
        %481 = vmatpush1.msra.mxu0 0.0
        %482 = vmatprep.subr.mxu0 0.0
        %483 = vmatpush1.msra.mxu0 0.0
        %484 = vmatprep.subr.mxu0 0.0
        %485 = vmatpush1.msra.mxu0 0.0
        %486 = vmatprep.subr.mxu0 0.0
        %487 = vmatpush1.msra.mxu0 0.0
        %488 = vmatprep.subr.mxu0 0.0
        %489 = vmatpush1.msra.mxu0 0.0
        %490 = vmatprep.subr.mxu0 0.0
        %491 = vmatpush1.msra.mxu0 0.0
        %492 = vmatprep.subr.mxu0 0.0
        %493 = vmatpush1.msra.mxu0 0.0
        %494 = vmatprep.subr.mxu0 0.0
        %495 = vmatpush1.msra.mxu0 0.0
        %496 = vmatprep.subr.mxu0 0.0
        %497 = vmatpush1.msra.mxu0 0.0
        %498 = vmatprep.subr.mxu0 0.0
        %499 = vmatpush1.msra.mxu0 0.0
        %500 = vmatprep.subr.mxu0 0.0
        %501 = vmatpush1.msra.mxu0 0.0
        %502 = vmatprep.mubr.f32.mxu0 0.0
        %503 = vmatmul.mubr.f32.gmra.mrb[0].mxu0 %v433
        %v504 = vpop.f32.mrb[0].mxu0
        %v505 = vadd.f32 0.0, %v504
        %v506 = vpop.f32.mrb[0].mxu0
        %507 = vmatprep.mubr.f32.mxu0 0.0
        %508 = vmatmul.mubr.f32.gmra.mrb[0].mxu0 %v436
        %v509 = vpop.f32.mrb[0].mxu0
        %v510 = vadd.f32 0.0, %v509
        %v511 = vpop.f32.mrb[0].mxu0
        %512 = vdwg.mxu0
        %v513 = vld [vmem:[%s2] sm:$0x1]
        %v515 = vlaneseq
        %v516 = vshrl.u32 %v515, 7
        %v517 = vsub.s32 0, %v516
        %v518 = vrot.slane %v513, %v517
        %v520 = vadd.f32 %v427, %v518
        %v521 = vadd.f32 %v430, %v518
        %v522 = vmul.f32 %v505, 2.0
        %v523 = vmul.f32 %v510, 2.0
        %v524 = vsub.f32 %v520, %v522
        %v525 = vsub.f32 %v521, %v523
        %v526 = vmax.f32 %v524, 0.0
        %v527 = vmax.f32 %v525, 0.0
        %v528 = vld [vmem:[%s3] sm:$0x1]
        %529 = vset.pattern.permute.xlu0 16
        %530 = vperm.xlu0 %529, %v420
        %v531 = vpop.permute.xlu0 %530
        %533 = vset.pattern.permute.xlu0 16
        %534 = vperm.xlu0 %533, %v421
        %v535 = vpop.permute.xlu0 %534
        %v538 = vlaneseq
        %v539 = vshrl.u32 %v538, 7
        %v540 = vsub.s32 0, %v539
        %v541 = vrot.slane %v528, %v540
        %vm543 = vcmp.eq.f32.partialorder %v531, %v541
        %vm544 = vcmp.eq.f32.partialorder %v535, %v541
        %v545 = vsel %vm543, %v526, 1e+30
        %v546 = vsel %vm544, %v527, 1e+30
        %vm547 = vcmask 130048
        %v548 = vsel %vm547, %v545, inf
        %549 = vmin.xlane.f32.xlu0 %v548
        %v550 = vpop.xlane.xlu0 %549
        %v551 = vsel %vm547, %v546, inf
        %552 = vmin.xlane.f32.xlu0 %v551
        %v553 = vpop.xlane.xlu0 %552
        %v554 = vmax.f32 %v550, 0.0
        %v555 = vmax.f32 %v553, 0.0
        %v556 = vrsqrt.pop %v554
        %v557 = vrsqrt.pop %v555
        %v558 = vmin.f32 %v556, 1e+10
        %v559 = vmin.f32 %v557, 1e+10
        %vm560 = vcmp.eq.f32.partialorder %v545, %v550
        %vm561 = vcmp.eq.f32.partialorder %v546, %v553
        %vm562 = vcmp.lt.f32.partialorder %v550, 1e+30
        %vm563 = vcmp.lt.f32.partialorder %v553, 1e+30
        %v564 = vsel %vm562, 1, 0
        %v565 = vsel %vm563, 1, 0
        %vm566 = vcmp.eq.s32.totalorder %v564, 1
        %vm567 = vcmp.eq.s32.totalorder %v565, 1
        %vm568 = vmand %vm560, %vm566
        %vm569 = vmand %vm561, %vm567
        %v570 = vsel %vm568, %v558, 0.0
        %v571 = vsel %vm569, %v559, 0.0
        %v572 = vsel %vm568, 1e+30, %v545
        %v573 = vsel %vm569, 1e+30, %v546
        %v574 = vsel %vm547, %v572, inf
        %575 = vmin.xlane.f32.xlu0 %v574
        %v576 = vpop.xlane.xlu0 %575
        %v577 = vsel %vm547, %v573, inf
        %578 = vmin.xlane.f32.xlu0 %v577
        %v579 = vpop.xlane.xlu0 %578
        %v580 = vmax.f32 %v576, 0.0
        %v581 = vmax.f32 %v579, 0.0
        %v582 = vrsqrt.pop %v580
        %v583 = vrsqrt.pop %v581
        %v584 = vmin.f32 %v582, 1e+10
        %v585 = vmin.f32 %v583, 1e+10
        %vm586 = vcmp.eq.f32.partialorder %v572, %v576
        %vm587 = vcmp.eq.f32.partialorder %v573, %v579
        %vm588 = vcmp.lt.f32.partialorder %v576, 1e+30
        %vm589 = vcmp.lt.f32.partialorder %v579, 1e+30
        %v590 = vsel %vm588, 1, 0
        %v591 = vsel %vm589, 1, 0
        %vm592 = vcmp.eq.s32.totalorder %v590, 1
        %vm593 = vcmp.eq.s32.totalorder %v591, 1
        %vm594 = vmand %vm586, %vm592
        %vm595 = vmand %vm587, %vm593
        %v596 = vsel %vm594, %v584, %v570
        %v597 = vsel %vm595, %v585, %v571
        %v598 = vsel %vm594, 1e+30, %v572
        %v599 = vsel %vm595, 1e+30, %v573
        %v600 = vsel %vm547, %v598, inf
        %601 = vmin.xlane.f32.xlu0 %v600
        %v602 = vpop.xlane.xlu0 %601
        %v603 = vsel %vm547, %v599, inf
        %604 = vmin.xlane.f32.xlu0 %v603
        %v605 = vpop.xlane.xlu0 %604
        %v606 = vmax.f32 %v602, 0.0
        %v607 = vmax.f32 %v605, 0.0
        %v608 = vrsqrt.pop %v606
        %v609 = vrsqrt.pop %v607
        %v610 = vmin.f32 %v608, 1e+10
        %v611 = vmin.f32 %v609, 1e+10
        %vm612 = vcmp.eq.f32.partialorder %v598, %v602
        %vm613 = vcmp.eq.f32.partialorder %v599, %v605
        %vm614 = vcmp.lt.f32.partialorder %v602, 1e+30
        %vm615 = vcmp.lt.f32.partialorder %v605, 1e+30
        %v616 = vsel %vm614, 1, 0
        %v617 = vsel %vm615, 1, 0
        %vm618 = vcmp.eq.s32.totalorder %v616, 1
        %vm619 = vcmp.eq.s32.totalorder %v617, 1
        %vm620 = vmand %vm612, %vm618
        %vm621 = vmand %vm613, %vm619
        %v622 = vsel %vm620, %v610, %v596
        %v623 = vsel %vm621, %v611, %v597
        %v624 = vsel %vm547, %v622, 0.0
        %625 = vadd.xlane.f32.xlu0 %v624
        %v626 = vpop.xlane.xlu0 %625
        %v627 = vsel %vm547, %v623, 0.0
        %628 = vadd.xlane.f32.xlu0 %v627
        %v629 = vpop.xlane.xlu0 %628
        %v630 = vadd.f32 %v626, 1e-16
        %v631 = vadd.f32 %v629, 1e-16
        %v632 = vrcp.pop %v630
        %v633 = vrcp.pop %v631
        %v634 = vpack.c.bf16 %v623, %v622
        %v635 = vld [vmem:[#allocation2] sm:$0xf]
        %v636 = vld [vmem:[#allocation2 + $0x4] sm:$0xf]
        %v639 = vunpack.c.l.b16 %v635
        %v640 = vunpack.c.l.b16 %v636
        %v641 = vpack.c.b16 %v640, %v639
        %v644 = vsel %vm547, %v634, 0
        %646 = vmatprep.subr.bf16.mxu0 0
        %647 = vmatpush1.bf16.msra.mxu0 %v641
        %648 = vmatprep.subr.bf16.mxu0 0
        %649 = vmatpush1.bf16.msra.mxu0 0
        %650 = vmatprep.subr.bf16.mxu0 0
        %651 = vmatpush1.bf16.msra.mxu0 0
        %652 = vmatprep.subr.bf16.mxu0 0
        %653 = vmatpush1.bf16.msra.mxu0 0
        %654 = vmatprep.subr.bf16.mxu0 0
        %655 = vmatpush1.bf16.msra.mxu0 0
        %656 = vmatprep.subr.bf16.mxu0 0
        %657 = vmatpush1.bf16.msra.mxu0 0
        %658 = vmatprep.subr.bf16.mxu0 0
        %659 = vmatpush1.bf16.msra.mxu0 0
        %660 = vmatprep.subr.bf16.mxu0 0
        %661 = vmatpush1.bf16.msra.mxu0 0
        %662 = vmatprep.subr.bf16.mxu0 0
        %663 = vmatpush1.bf16.msra.mxu0 0
        %664 = vmatprep.subr.bf16.mxu0 0
        %665 = vmatpush1.bf16.msra.mxu0 0
        %666 = vmatprep.subr.bf16.mxu0 0
        %667 = vmatpush1.bf16.msra.mxu0 0
        %668 = vmatprep.subr.bf16.mxu0 0
        %669 = vmatpush1.bf16.msra.mxu0 0
        %670 = vmatprep.subr.bf16.mxu0 0
        %671 = vmatpush1.bf16.msra.mxu0 0
        %672 = vmatprep.subr.bf16.mxu0 0
        %673 = vmatpush1.bf16.msra.mxu0 0
        %674 = vmatprep.subr.bf16.mxu0 0
        %675 = vmatpush1.bf16.msra.mxu0 0
        %676 = vmatprep.subr.bf16.mxu0 0
        %677 = vmatpush1.bf16.msra.mxu0 0
        %678 = vmatprep.mubr.bf16.mxu0 0
        %679 = vmatmul.mubr.bf16.gmra.mrb[0].mxu0 %v644
        %v680 = vpop.f32.mrb[0].mxu0
        %v681 = vadd.f32 0.0, %v680
        %v682 = vpop.f32.mrb[0].mxu0
        %v683 = vpop.f32.mrb[0].mxu0
        %v684 = vadd.f32 0.0, %v683
        %v685 = vpop.f32.mrb[0].mxu0
        %686 = vdwg.mxu0
        %v687 = vmul.f32 %v681, %v632
        %v688 = vmul.f32 %v684, %v633
        %v689 = vld [vmem:[%s5] sm:$0xff]
        %690 = vrot.lane.b32.xlu0 %v420, 120
        %v691 = vpop.permute.xlu0 %690
        %692 = vrot.lane.b32.xlu0 %v421, 120
        %v693 = vpop.permute.xlu0 %692
        %v694 = vsel %vm424, %v691, 0
        %v696 = vsel %vm424, %v693, 0
        %698 = vmatprep.subr.mxu0 0.0
        %699 = vmatpush1.msra.mxu0 %v689
        %700 = vmatprep.subr.mxu0 0.0
        %701 = vmatpush1.msra.mxu0 0.0
        %702 = vmatprep.subr.mxu0 0.0
        %703 = vmatpush1.msra.mxu0 0.0
        %704 = vmatprep.subr.mxu0 0.0
        %705 = vmatpush1.msra.mxu0 0.0
        %706 = vmatprep.subr.mxu0 0.0
        %707 = vmatpush1.msra.mxu0 0.0
        %708 = vmatprep.subr.mxu0 0.0
        %709 = vmatpush1.msra.mxu0 0.0
        %710 = vmatprep.subr.mxu0 0.0
        %711 = vmatpush1.msra.mxu0 0.0
        %712 = vmatprep.subr.mxu0 0.0
        %713 = vmatpush1.msra.mxu0 0.0
        %714 = vmatprep.subr.mxu0 0.0
        %715 = vmatpush1.msra.mxu0 0.0
        %716 = vmatprep.subr.mxu0 0.0
        %717 = vmatpush1.msra.mxu0 0.0
        %718 = vmatprep.subr.mxu0 0.0
        %719 = vmatpush1.msra.mxu0 0.0
        %720 = vmatprep.subr.mxu0 0.0
        %721 = vmatpush1.msra.mxu0 0.0
        %722 = vmatprep.subr.mxu0 0.0
        %723 = vmatpush1.msra.mxu0 0.0
        %724 = vmatprep.subr.mxu0 0.0
        %725 = vmatpush1.msra.mxu0 0.0
        %726 = vmatprep.subr.mxu0 0.0
        %727 = vmatpush1.msra.mxu0 0.0
        %728 = vmatprep.subr.mxu0 0.0
        %729 = vmatpush1.msra.mxu0 0.0
        %730 = vmatprep.subr.mxu0 0.0
        %731 = vmatpush1.msra.mxu0 0.0
        %732 = vmatprep.subr.mxu0 0.0
        %733 = vmatpush1.msra.mxu0 0.0
        %734 = vmatprep.subr.mxu0 0.0
        %735 = vmatpush1.msra.mxu0 0.0
        %736 = vmatprep.subr.mxu0 0.0
        %737 = vmatpush1.msra.mxu0 0.0
        %738 = vmatprep.subr.mxu0 0.0
        %739 = vmatpush1.msra.mxu0 0.0
        %740 = vmatprep.subr.mxu0 0.0
        %741 = vmatpush1.msra.mxu0 0.0
        %742 = vmatprep.subr.mxu0 0.0
        %743 = vmatpush1.msra.mxu0 0.0
        %744 = vmatprep.subr.mxu0 0.0
        %745 = vmatpush1.msra.mxu0 0.0
        %746 = vmatprep.subr.mxu0 0.0
        %747 = vmatpush1.msra.mxu0 0.0
        %748 = vmatprep.subr.mxu0 0.0
        %749 = vmatpush1.msra.mxu0 0.0
        %750 = vmatprep.subr.mxu0 0.0
        %751 = vmatpush1.msra.mxu0 0.0
        %752 = vmatprep.subr.mxu0 0.0
        %753 = vmatpush1.msra.mxu0 0.0
        %754 = vmatprep.subr.mxu0 0.0
        %755 = vmatpush1.msra.mxu0 0.0
        %756 = vmatprep.subr.mxu0 0.0
        %757 = vmatpush1.msra.mxu0 0.0
        %758 = vmatprep.subr.mxu0 0.0
        %759 = vmatpush1.msra.mxu0 0.0
        %760 = vmatprep.subr.mxu0 0.0
        %761 = vmatpush1.msra.mxu0 0.0
        %762 = vmatprep.mubr.f32.mxu0 0.0
        %763 = vmatmul.mubr.f32.gmra.mrb[0].mxu0 %v694
        %v764 = vpop.f32.mrb[0].mxu0
        %v765 = vadd.f32 0.0, %v764
        %v766 = vpop.f32.mrb[0].mxu0
        %767 = vmatprep.mubr.f32.mxu0 0.0
        %768 = vmatmul.mubr.f32.gmra.mrb[0].mxu0 %v696
        %v769 = vpop.f32.mrb[0].mxu0
        %v770 = vadd.f32 0.0, %v769
        %v771 = vpop.f32.mrb[0].mxu0
        %772 = vdwg.mxu0
        %v773 = vadd.f32 %v687, %v765
        %v774 = vadd.f32 %v688, %v770
        %v775 = vld [vmem:[%s6] sm:$0xff]
        %776 = vmatprep.subr.mxu0 0.0
        %777 = vmatpush1.msra.mxu0 %v775
        %778 = vmatprep.subr.mxu0 0.0
        %779 = vmatpush1.msra.mxu0 0.0
        %780 = vmatprep.subr.mxu0 0.0
        %781 = vmatpush1.msra.mxu0 0.0
        %782 = vmatprep.subr.mxu0 0.0
        %783 = vmatpush1.msra.mxu0 0.0
        %784 = vmatprep.subr.mxu0 0.0
        %785 = vmatpush1.msra.mxu0 0.0
        %786 = vmatprep.subr.mxu0 0.0
        %787 = vmatpush1.msra.mxu0 0.0
        %788 = vmatprep.subr.mxu0 0.0
        %789 = vmatpush1.msra.mxu0 0.0
        %790 = vmatprep.subr.mxu0 0.0
        %791 = vmatpush1.msra.mxu0 0.0
        %792 = vmatprep.subr.mxu0 0.0
        %793 = vmatpush1.msra.mxu0 0.0
        %794 = vmatprep.subr.mxu0 0.0
        %795 = vmatpush1.msra.mxu0 0.0
        %796 = vmatprep.subr.mxu0 0.0
        %797 = vmatpush1.msra.mxu0 0.0
        %798 = vmatprep.subr.mxu0 0.0
        %799 = vmatpush1.msra.mxu0 0.0
        %800 = vmatprep.subr.mxu0 0.0
        %801 = vmatpush1.msra.mxu0 0.0
        %802 = vmatprep.subr.mxu0 0.0
        %803 = vmatpush1.msra.mxu0 0.0
        %804 = vmatprep.subr.mxu0 0.0
        %805 = vmatpush1.msra.mxu0 0.0
        %806 = vmatprep.subr.mxu0 0.0
        %807 = vmatpush1.msra.mxu0 0.0
        %808 = vmatprep.subr.mxu0 0.0
        %809 = vmatpush1.msra.mxu0 0.0
        %810 = vmatprep.subr.mxu0 0.0
        %811 = vmatpush1.msra.mxu0 0.0
        %812 = vmatprep.subr.mxu0 0.0
        %813 = vmatpush1.msra.mxu0 0.0
        %814 = vmatprep.subr.mxu0 0.0
        %815 = vmatpush1.msra.mxu0 0.0
        %816 = vmatprep.subr.mxu0 0.0
        %817 = vmatpush1.msra.mxu0 0.0
        %818 = vmatprep.subr.mxu0 0.0
        %819 = vmatpush1.msra.mxu0 0.0
        %820 = vmatprep.subr.mxu0 0.0
        %821 = vmatpush1.msra.mxu0 0.0
        %822 = vmatprep.subr.mxu0 0.0
        %823 = vmatpush1.msra.mxu0 0.0
        %824 = vmatprep.subr.mxu0 0.0
        %825 = vmatpush1.msra.mxu0 0.0
        %826 = vmatprep.subr.mxu0 0.0
        %827 = vmatpush1.msra.mxu0 0.0
        %828 = vmatprep.subr.mxu0 0.0
        %829 = vmatpush1.msra.mxu0 0.0
        %830 = vmatprep.subr.mxu0 0.0
        %831 = vmatpush1.msra.mxu0 0.0
        %832 = vmatprep.subr.mxu0 0.0
        %833 = vmatpush1.msra.mxu0 0.0
        %834 = vmatprep.subr.mxu0 0.0
        %835 = vmatpush1.msra.mxu0 0.0
        %836 = vmatprep.subr.mxu0 0.0
        %837 = vmatpush1.msra.mxu0 0.0
        %838 = vmatprep.subr.mxu0 0.0
        %839 = vmatpush1.msra.mxu0 0.0
        %840 = vmatprep.mubr.f32.mxu0 0.0
        %841 = vmatmul.mubr.f32.gmra.mrb[0].mxu0 %v433
        %v842 = vpop.f32.mrb[0].mxu0
        %v843 = vadd.f32 0.0, %v842
        %v844 = vpop.f32.mrb[0].mxu0
        %845 = vmatprep.mubr.f32.mxu0 0.0
        %846 = vmatmul.mubr.f32.gmra.mrb[0].mxu0 %v436
        %v847 = vpop.f32.mrb[0].mxu0
        %v848 = vadd.f32 0.0, %v847
        %v849 = vpop.f32.mrb[0].mxu0
        %850 = vdwg.mxu0
        %v851 = vadd.f32 %v773, %v843
        %v852 = vadd.f32 %v774, %v848
        %v853 = vld [vmem:[%s7] sm:$0x1]
        %v855 = vlaneseq
        %v856 = vshrl.u32 %v855, 7
        %v857 = vsub.s32 0, %v856
        %v858 = vrot.slane %v853, %v857
        %v860 = vadd.f32 %v851, %v858
        %v861 = vadd.f32 %v852, %v858
        %v862 = vmax.f32 %v860, 0.0
        %v863 = vmax.f32 %v861, 0.0
        %v864 = vpack.c.bf16 %v863, %v862
        %v865 = vld [vmem:[#allocation8] sm:$0xf]
        %v866 = vld [vmem:[#allocation8 + $0x4] sm:$0xf]
        %v867 = vld [vmem:[#allocation8 + $0x8] sm:$0xf]
        %v868 = vld [vmem:[#allocation8 + $0xc] sm:$0xf]
        %v869 = vld [vmem:[#allocation8 + $0x10] sm:$0xf]
        %v870 = vld [vmem:[#allocation8 + $0x14] sm:$0xf]
        %v871 = vld [vmem:[#allocation8 + $0x18] sm:$0xf]
        %v872 = vld [vmem:[#allocation8 + $0x1c] sm:$0xf]
        %v873 = vld [vmem:[#allocation8 + $0x20] sm:$0xf]
        %v874 = vld [vmem:[#allocation8 + $0x24] sm:$0xf]
        %v875 = vld [vmem:[#allocation8 + $0x28] sm:$0xf]
        %v876 = vld [vmem:[#allocation8 + $0x2c] sm:$0xf]
        %v877 = vld [vmem:[#allocation8 + $0x30] sm:$0xf]
        %v878 = vld [vmem:[#allocation8 + $0x34] sm:$0xf]
        %v879 = vld [vmem:[#allocation8 + $0x38] sm:$0xf]
        %v880 = vld [vmem:[#allocation8 + $0x3c] sm:$0xf]
        %v881 = vld [vmem:[%s9] sm:$0x1]
        %v883 = vlaneseq
        %v884 = vshrl.u32 %v883, 7
        %v885 = vsub.s32 0, %v884
        %v886 = vrot.slane %v881, %v885
        %v904 = vunpack.c.l.b16 %v865
        %v905 = vunpack.c.l.b16 %v866
        %v906 = vunpack.c.l.b16 %v867
        %v907 = vunpack.c.l.b16 %v868
        %v908 = vunpack.c.l.b16 %v869
        %v909 = vunpack.c.l.b16 %v870
        %v910 = vunpack.c.l.b16 %v871
        %v911 = vunpack.c.l.b16 %v872
        %v912 = vunpack.c.l.b16 %v873
        %v913 = vunpack.c.l.b16 %v874
        %v914 = vunpack.c.l.b16 %v875
        %v915 = vunpack.c.l.b16 %v876
        %v916 = vunpack.c.l.b16 %v877
        %v917 = vunpack.c.l.b16 %v878
        %v918 = vunpack.c.l.b16 %v879
        %v919 = vunpack.c.l.b16 %v880
        %v920 = vpack.c.b16 %v905, %v904
        %v921 = vpack.c.b16 %v907, %v906
        %v922 = vpack.c.b16 %v909, %v908
        %v923 = vpack.c.b16 %v911, %v910
        %v924 = vpack.c.b16 %v913, %v912
        %v925 = vpack.c.b16 %v915, %v914
        %v926 = vpack.c.b16 %v917, %v916
        %v927 = vpack.c.b16 %v919, %v918
        %936 = vmatprep.subr.bf16.mxu0 0
        %937 = vmatpush1.bf16.msra.mxu0 %v920
        %938 = vmatprep.subr.bf16.mxu0 0
        %939 = vmatpush1.bf16.msra.mxu0 %v921
        %940 = vmatprep.subr.bf16.mxu0 0
        %941 = vmatpush1.bf16.msra.mxu0 %v922
        %942 = vmatprep.subr.bf16.mxu0 0
        %943 = vmatpush1.bf16.msra.mxu0 %v923
        %944 = vmatprep.subr.bf16.mxu0 0
        %945 = vmatpush1.bf16.msra.mxu0 %v924
        %946 = vmatprep.subr.bf16.mxu0 0
        %947 = vmatpush1.bf16.msra.mxu0 %v925
        %948 = vmatprep.subr.bf16.mxu0 0
        %949 = vmatpush1.bf16.msra.mxu0 %v926
        %950 = vmatprep.subr.bf16.mxu0 0
        %951 = vmatpush1.bf16.msra.mxu0 %v927
        %952 = vmatprep.subr.bf16.mxu0 0
        %953 = vmatpush1.bf16.msra.mxu0 0
        %954 = vmatprep.subr.bf16.mxu0 0
        %955 = vmatpush1.bf16.msra.mxu0 0
        %956 = vmatprep.subr.bf16.mxu0 0
        %957 = vmatpush1.bf16.msra.mxu0 0
        %958 = vmatprep.subr.bf16.mxu0 0
        %959 = vmatpush1.bf16.msra.mxu0 0
        %960 = vmatprep.subr.bf16.mxu0 0
        %961 = vmatpush1.bf16.msra.mxu0 0
        %962 = vmatprep.subr.bf16.mxu0 0
        %963 = vmatpush1.bf16.msra.mxu0 0
        %964 = vmatprep.subr.bf16.mxu0 0
        %965 = vmatpush1.bf16.msra.mxu0 0
        %966 = vmatprep.subr.bf16.mxu0 0
        %967 = vmatpush1.bf16.msra.mxu0 0
        %968 = vmatprep.mubr.bf16.mxu0 0
        %969 = vmatmul.mubr.bf16.gmra.mrb[0].mxu0 %v864
        %v970 = vpop.f32.mrb[0].mxu0
        %v971 = vadd.f32 %v886, %v970
        %v972 = vpop.f32.mrb[0].mxu0
        %v973 = vpop.f32.mrb[0].mxu0
        %v974 = vadd.f32 %v886, %v973
        %v975 = vpop.f32.mrb[0].mxu0
        %976 = vdwg.mxu0
        %v977 = vmax.f32 %v971, 0.0
        %v978 = vmax.f32 %v974, 0.0
        %979 = vst [vmem:[%s416] sm:$0xff] %v977
        %980 = vst [vmem:[%s416 + $0x8] sm:$0xff] %v978
        %s981 = sand.u32 %s249, 1
        %s982 = scalar_lea.sflag [#allocation4], %s981
        %s983 = sand.u32 %s249, 1
        %s984 = smul.addr %s983, 16
        %s985 = scalar_lea.vmem [#allocation9], %s984
        // Predicated region
        $region77: #{tpu_custom_call.1} parent=59 // pred_check
          %p986 = pneg %p259
        $region78: #{tpu_custom_call.1} parent=59 // pred_check_branch
          %988 = sbr.rel (%p986) target = $region80
        $region79: #{tpu_custom_call.1} parent=59 // pred_region
          %s989 = smul.u32 2, %s26
          %s991 = ssub.s32 256, 256
          %992 = vsyncadd %s982, %s991
          %s993 = smul.addr %s989, 128
          %s994 = scalar_lea.hbm %s10, %s993
          %s995 = sshll.u32 %s985, 4
          %s996 = int_to_ptr.vmem [resolvable:$true] %s995
          %1001 = dma.vmem_to_hbm [thread:$0]  %s996, 256, %s994, %s982, 128, 128, 8
        $region80: #{tpu_custom_call.1} parent=59 // pred_fallthru
          _
      $region60: #{tpu_custom_call.1} parent=5 // pred_fallthru
        _
      %p1002 = scmp.le.s32.totalorder 2, %s21
      // Predicated region
      $region81: #{tpu_custom_call.1} parent=5 // pred_check
        %p1003 = pneg %p1002
      $region82: #{tpu_custom_call.1} parent=5 // pred_check_branch
        %1005 = sbr.rel (%p1003) target = $region84
      $region83: #{tpu_custom_call.1} parent=5 // pred_region
        %s1006 = ssub.s32 %s21, 2
        // Predicated region
        $region85: #{tpu_custom_call.1} parent=83 // pred_check
          %p1007 = pneg %p265
        $region86: #{tpu_custom_call.1} parent=83 // pred_check_branch
          %1009 = sbr.rel (%p1007) target = $region88
        $region87: #{tpu_custom_call.1} parent=83 // pred_region
          %s1010 = sand.u32 %s250, 1
          %s1011 = scalar_lea.sflag [#allocation4], %s1010
          %s1012 = sand.u32 %s250, 1
          %s1013 = smul.addr %s1012, 16
          %s1014 = scalar_lea.vmem [#allocation9], %s1013
          %1015 = dma.done %s1011, 256
        $region88: #{tpu_custom_call.1} parent=83 // pred_fallthru
          _
      $region84: #{tpu_custom_call.1} parent=5 // pred_fallthru
        _
    $region6: #{tpu_custom_call.1} parent=1 // loop_footer
      %s25 = sadd.s32 1, %s21
    $region7: #{tpu_custom_call.1} parent=1 // loop_footer_branch
      %20 = sbr.rel target = $region3
    $region8: #{tpu_custom_call.1} parent=1 // loop_exit
      _
    %1016 = vsyncpa [#allocation3], 1
    %s1017 = scalar_lea.sflag [#allocation3], 1
    %1018 = vsyncpa %s1017, 1
    %1019 = vsyncpa [#allocation6], 1
    %1020 = vsyncpa [#allocation4], 1
    %s1021 = scalar_lea.sflag [#allocation4], 1
    %1022 = vsyncpa %s1021, 1

// kernel: tpu_custom_call.1
$region0: #{tpu_custom_call.1}
  #allocation0 [shape = 'u32[]', space=smem, size = 0x4, offset = 0x4, fixed_abs, tag = 'smem constant byte address 0x4 - core index']
  #allocation1 [shape = 'u32[144,128]{1,0:T(1,128)}', space=vmem, size = 0x12000, scoped, tag = 'internal scratch']
  %s0 = inlined_call_operand.hbm [shape: bf16[16,128], index: 0, kind: input, shape index: {}]
  %s1 = inlined_call_operand.hbm [shape: f32[8,16], index: 1, kind: input, shape index: {}]
  %s2 = inlined_call_operand.vmem [shape: f32[1,16], index: 2, kind: input, shape index: {}]
  %s3 = inlined_call_operand.vmem [shape: f32[1,16], index: 3, kind: input, shape index: {}]
  %s4 = inlined_call_operand.hbm [shape: f32[32,128], index: 4, kind: input, shape index: {}]
  %s5 = inlined_call_operand.vmem [shape: f32[8,128], index: 5, kind: input, shape index: {}]
  %s6 = inlined_call_operand.vmem [shape: f32[8,128], index: 6, kind: input, shape index: {}]
  %s7 = inlined_call_operand.vmem [shape: f32[1,128], index: 7, kind: input, shape index: {}]
  %s8 = inlined_call_operand.hbm [shape: bf16[128,128], index: 8, kind: input, shape index: {}]
  %s9 = inlined_call_operand.vmem [shape: f32[1,128], index: 9, kind: input, shape index: {}]
  %s10 = inlined_call_operand.hbm [shape: f32[32,128], index: 10, kind: output, shape index: {}]
  %s11 = sld [smem:[#allocation0]]
  $region89: #{tpu_custom_call.1} parent=0
    _
  %s13 = ssub.s32 1, %s11
  %s14 = scalar_select 0, %s13, %s11
  $region1: #{tpu_custom_call.1} parent=0
    #allocation2 [shape = 'u8[4096]{0}', space=vmem, size = 0x1000, scoped, tag = 'input window, operand 0, single buffered']
    #allocation3 [shape = 's32[2]{0}', space=sflag, size = 0x8, scoped, tag = 'scoped memory for tpu_custom_call.1']
    #allocation4 [shape = 's32[2]{0}', space=sflag, size = 0x8, scoped, tag = 'scoped memory for tpu_custom_call.1']
    #allocation5 [shape = 'u8[4096]{0}', space=vmem, size = 0x1000, scoped, tag = 'input window, operand 1, single buffered']
    #allocation6 [shape = 's32[1]{0}', space=sflag, size = 0x4, scoped, tag = 'scoped memory for tpu_custom_call.1']
    #allocation7 [shape = 'u8[16384]{0}', space=vmem, size = 0x4000, scoped, tag = 'input window, operand 4']
    #allocation8 [shape = 'u8[32768]{0}', space=vmem, size = 0x8000, scoped, tag = 'input window, operand 8, single buffered']
    #allocation9 [shape = 'u8[16384]{0}', space=vmem, size = 0x4000, scoped, tag = 'output window, operand 0']
    %15 = vsyncpa [#allocation3], 0
    %16 = vsyncpa [#allocation6], 0
    %17 = vsyncpa [#allocation4], 0
    %s18 = scalar_lea.sflag [#allocation4], 1
    %19 = vsyncpa %s18, 0
    loop: start=0, step=1, limit=4
    $region2: #{tpu_custom_call.1} parent=1 // loop_pre_header
      _
    $region3: #{tpu_custom_call.1} parent=1 // loop_header
      %s21 = sphi 0, %s25
      %p22 = scmp.ge.s32.totalorder %s21, 4
      %s29 = sphi 0, %s29
      %s31 = sphi 0, %s29
      %s32 = sphi 0, %s31
      %s46 = sphi 0, %s32
      %s50 = sphi 0, %s50
      %s52 = sphi 0, %s50
      %s53 = sphi 0, %s52
      %s67 = sphi 0, %s53
      %s71 = sphi 0, %s71
      %s73 = sphi 0, %s71
      %s74 = sphi 0, %s73
      %s88 = sphi 0, %s74
      %s92 = sphi 0, %s92
      %s94 = sphi 0, %s92
      %s95 = sphi 0, %s94
      %s109 = sphi 0, %s95
      %s115 = sphi 0, %s117
      %s118 = sphi 0, %s115
      %s119 = sphi 0, %s118
      %s135 = sphi 0, %s119
      %s139 = sphi 0, %s139
      %s141 = sphi 0, %s139
      %s142 = sphi 0, %s141
      %s156 = sphi 0, %s142
      %s160 = sphi 0, %s160
      %s162 = sphi 0, %s160
      %s163 = sphi 0, %s162
      %s177 = sphi 0, %s163
      %s181 = sphi 0, %s181
      %s183 = sphi 0, %s181
      %s184 = sphi 0, %s183
      %s198 = sphi 0, %s184
      %s202 = sphi 0, %s202
      %s204 = sphi 0, %s202
      %s205 = sphi 0, %s204
      %s219 = sphi 0, %s205
      %s223 = sphi 0, %s223
      %s225 = sphi 0, %s223
      %s226 = sphi 0, %s225
      %s240 = sphi 0, %s226
      %s246 = sphi 0, %s248
      %s249 = sphi 0, %s246
      %s250 = sphi 0, %s249
      %s266 = sphi 0, %s250
    $region4: #{tpu_custom_call.1} parent=1 // loop_header_branch
      %24 = sbr.rel (%p22) target = $region8
    $region5: #{tpu_custom_call.1} parent=1 // loop_body
      %s26 = ssub.s32 %s21, 1
      %s27 = ssub.s32 %s21, 2
      %s28 = sadd.s32 %s21, 1
      %s30 = sadd.s32 %s29, 1
      %p33 = scmp.eq.s32.totalorder %s21, 1
      %p34 = scmp.ne.s32.totalorder %s29, %s31
      %p35 = scmp.eq.s32.totalorder %s21, 0
      %p36 = por %p34, %p35
      %p37 = scmp.ne.s32.totalorder %s29, %s31
      %p38 = scmp.eq.s32.totalorder %s26, 1
      %p39 = por %p37, %p38
      %p40 = scmp.ne.s32.totalorder %s31, %s32
      %p41 = scmp.eq.s32.totalorder %s26, 0
      %p42 = por %p40, %p41
      %p43 = scmp.ne.s32.totalorder %s31, %s32
      %p44 = scmp.eq.s32.totalorder %s27, 1
      %p45 = por %p43, %p44
      %p47 = scmp.ne.s32.totalorder %s32, %s46
      %p48 = scmp.eq.s32.totalorder %s27, 0
      %p49 = por %p47, %p48
      %s51 = sadd.s32 %s50, 1
      %p54 = scmp.eq.s32.totalorder %s21, 1
      %p55 = scmp.ne.s32.totalorder %s50, %s52
      %p56 = scmp.eq.s32.totalorder %s21, 0
      %p57 = por %p55, %p56
      %p58 = scmp.ne.s32.totalorder %s50, %s52
      %p59 = scmp.eq.s32.totalorder %s26, 1
      %p60 = por %p58, %p59
      %p61 = scmp.ne.s32.totalorder %s52, %s53
      %p62 = scmp.eq.s32.totalorder %s26, 0
      %p63 = por %p61, %p62
      %p64 = scmp.ne.s32.totalorder %s52, %s53
      %p65 = scmp.eq.s32.totalorder %s27, 1
      %p66 = por %p64, %p65
      %p68 = scmp.ne.s32.totalorder %s53, %s67
      %p69 = scmp.eq.s32.totalorder %s27, 0
      %p70 = por %p68, %p69
      %s72 = sadd.s32 %s71, 1
      %p75 = scmp.eq.s32.totalorder %s21, 1
      %p76 = scmp.ne.s32.totalorder %s71, %s73
      %p77 = scmp.eq.s32.totalorder %s21, 0
      %p78 = por %p76, %p77
      %p79 = scmp.ne.s32.totalorder %s71, %s73
      %p80 = scmp.eq.s32.totalorder %s26, 1
      %p81 = por %p79, %p80
      %p82 = scmp.ne.s32.totalorder %s73, %s74
      %p83 = scmp.eq.s32.totalorder %s26, 0
      %p84 = por %p82, %p83
      %p85 = scmp.ne.s32.totalorder %s73, %s74
      %p86 = scmp.eq.s32.totalorder %s27, 1
      %p87 = por %p85, %p86
      %p89 = scmp.ne.s32.totalorder %s74, %s88
      %p90 = scmp.eq.s32.totalorder %s27, 0
      %p91 = por %p89, %p90
      %s93 = sadd.s32 %s92, 1
      %p96 = scmp.eq.s32.totalorder %s21, 1
      %p97 = scmp.ne.s32.totalorder %s92, %s94
      %p98 = scmp.eq.s32.totalorder %s21, 0
      %p99 = por %p97, %p98
      %p100 = scmp.ne.s32.totalorder %s92, %s94
      %p101 = scmp.eq.s32.totalorder %s26, 1
      %p102 = por %p100, %p101
      %p103 = scmp.ne.s32.totalorder %s94, %s95
      %p104 = scmp.eq.s32.totalorder %s26, 0
      %p105 = por %p103, %p104
      %p106 = scmp.ne.s32.totalorder %s94, %s95
      %p107 = scmp.eq.s32.totalorder %s27, 1
      %p108 = por %p106, %p107
      %p110 = scmp.ne.s32.totalorder %s95, %s109
      %p111 = scmp.eq.s32.totalorder %s27, 0
      %p112 = por %p110, %p111
      %s113 = ssub.s32 %s21, %s28
      %p114 = scmp.eq.s32.totalorder %s113, 0
      %s116 = sadd.s32 %s115, 1
      %s117 = scalar_select %p114, %s115, %s116
      %p120 = pneg %p114
      %p121 = scmp.eq.s32.totalorder %s21, 1
      %p122 = por %p120, %p121
      %p123 = scmp.ne.s32.totalorder %s115, %s118
      %p124 = scmp.eq.s32.totalorder %s21, 0
      %p125 = por %p123, %p124
      %p126 = scmp.ne.s32.totalorder %s115, %s118
      %p127 = scmp.eq.s32.totalorder %s26, 1
      %p128 = por %p126, %p127
      %p129 = scmp.ne.s32.totalorder %s118, %s119
      %p130 = scmp.eq.s32.totalorder %s26, 0
      %p131 = por %p129, %p130
      %p132 = scmp.ne.s32.totalorder %s118, %s119
      %p133 = scmp.eq.s32.totalorder %s27, 1
      %p134 = por %p132, %p133
      %p136 = scmp.ne.s32.totalorder %s119, %s135
      %p137 = scmp.eq.s32.totalorder %s27, 0
      %p138 = por %p136, %p137
      %s140 = sadd.s32 %s139, 1
      %p143 = scmp.eq.s32.totalorder %s21, 1
      %p144 = scmp.ne.s32.totalorder %s139, %s141
      %p145 = scmp.eq.s32.totalorder %s21, 0
      %p146 = por %p144, %p145
      %p147 = scmp.ne.s32.totalorder %s139, %s141
      %p148 = scmp.eq.s32.totalorder %s26, 1
      %p149 = por %p147, %p148
      %p150 = scmp.ne.s32.totalorder %s141, %s142
      %p151 = scmp.eq.s32.totalorder %s26, 0
      %p152 = por %p150, %p151
      %p153 = scmp.ne.s32.totalorder %s141, %s142
      %p154 = scmp.eq.s32.totalorder %s27, 1
      %p155 = por %p153, %p154
      %p157 = scmp.ne.s32.totalorder %s142, %s156
      %p158 = scmp.eq.s32.totalorder %s27, 0
      %p159 = por %p157, %p158
      %s161 = sadd.s32 %s160, 1
      %p164 = scmp.eq.s32.totalorder %s21, 1
      %p165 = scmp.ne.s32.totalorder %s160, %s162
      %p166 = scmp.eq.s32.totalorder %s21, 0
      %p167 = por %p165, %p166
      %p168 = scmp.ne.s32.totalorder %s160, %s162
      %p169 = scmp.eq.s32.totalorder %s26, 1
      %p170 = por %p168, %p169
      %p171 = scmp.ne.s32.totalorder %s162, %s163
      %p172 = scmp.eq.s32.totalorder %s26, 0
      %p173 = por %p171, %p172
      %p174 = scmp.ne.s32.totalorder %s162, %s163
      %p175 = scmp.eq.s32.totalorder %s27, 1
      %p176 = por %p174, %p175
      %p178 = scmp.ne.s32.totalorder %s163, %s177
      %p179 = scmp.eq.s32.totalorder %s27, 0
      %p180 = por %p178, %p179
      %s182 = sadd.s32 %s181, 1
      %p185 = scmp.eq.s32.totalorder %s21, 1
      %p186 = scmp.ne.s32.totalorder %s181, %s183
      %p187 = scmp.eq.s32.totalorder %s21, 0
      %p188 = por %p186, %p187
      %p189 = scmp.ne.s32.totalorder %s181, %s183
      %p190 = scmp.eq.s32.totalorder %s26, 1
      %p191 = por %p189, %p190
      %p192 = scmp.ne.s32.totalorder %s183, %s184
      %p193 = scmp.eq.s32.totalorder %s26, 0
      %p194 = por %p192, %p193
      %p195 = scmp.ne.s32.totalorder %s183, %s184
      %p196 = scmp.eq.s32.totalorder %s27, 1
      %p197 = por %p195, %p196
      %p199 = scmp.ne.s32.totalorder %s184, %s198
      %p200 = scmp.eq.s32.totalorder %s27, 0
      %p201 = por %p199, %p200
      %s203 = sadd.s32 %s202, 1
      %p206 = scmp.eq.s32.totalorder %s21, 1
      %p207 = scmp.ne.s32.totalorder %s202, %s204
      %p208 = scmp.eq.s32.totalorder %s21, 0
      %p209 = por %p207, %p208
      %p210 = scmp.ne.s32.totalorder %s202, %s204
      %p211 = scmp.eq.s32.totalorder %s26, 1
      %p212 = por %p210, %p211
      %p213 = scmp.ne.s32.totalorder %s204, %s205
      %p214 = scmp.eq.s32.totalorder %s26, 0
      %p215 = por %p213, %p214
      %p216 = scmp.ne.s32.totalorder %s204, %s205
      %p217 = scmp.eq.s32.totalorder %s27, 1
      %p218 = por %p216, %p217
      %p220 = scmp.ne.s32.totalorder %s205, %s219
      %p221 = scmp.eq.s32.totalorder %s27, 0
      %p222 = por %p220, %p221
      %s224 = sadd.s32 %s223, 1
      %p227 = scmp.eq.s32.totalorder %s21, 1
      %p228 = scmp.ne.s32.totalorder %s223, %s225
      %p229 = scmp.eq.s32.totalorder %s21, 0
      %p230 = por %p228, %p229
      %p231 = scmp.ne.s32.totalorder %s223, %s225
      %p232 = scmp.eq.s32.totalorder %s26, 1
      %p233 = por %p231, %p232
      %p234 = scmp.ne.s32.totalorder %s225, %s226
      %p235 = scmp.eq.s32.totalorder %s26, 0
      %p236 = por %p234, %p235
      %p237 = scmp.ne.s32.totalorder %s225, %s226
      %p238 = scmp.eq.s32.totalorder %s27, 1
      %p239 = por %p237, %p238
      %p241 = scmp.ne.s32.totalorder %s226, %s240
      %p242 = scmp.eq.s32.totalorder %s27, 0
      %p243 = por %p241, %p242
      %s244 = ssub.s32 %s21, %s28
      %p245 = scmp.eq.s32.totalorder %s244, 0
      %s247 = sadd.s32 %s246, 1
      %s248 = scalar_select %p245, %s246, %s247
      %p251 = pneg %p245
      %p252 = scmp.eq.s32.totalorder %s21, 1
      %p253 = por %p251, %p252
      %p254 = scmp.ne.s32.totalorder %s246, %s249
      %p255 = scmp.eq.s32.totalorder %s21, 0
      %p256 = por %p254, %p255
      %p257 = scmp.ne.s32.totalorder %s246, %s249
      %p258 = scmp.eq.s32.totalorder %s26, 1
      %p259 = por %p257, %p258
      %p260 = scmp.ne.s32.totalorder %s249, %s250
      %p261 = scmp.eq.s32.totalorder %s26, 0
      %p262 = por %p260, %p261
      %p263 = scmp.ne.s32.totalorder %s249, %s250
      %p264 = scmp.eq.s32.totalorder %s27, 1
      %p265 = por %p263, %p264
      %p267 = scmp.ne.s32.totalorder %s250, %s266
      %p268 = scmp.eq.s32.totalorder %s27, 0
      %p269 = por %p267, %p268
      %p270 = scmp.le.s32.totalorder 1, %s21
      %p271 = scmp.lt.s32.totalorder %s21, 3
      %p272 = pnand %p270, %p271
      %p273 = pneg %p272
      // Predicated region
      $region9: #{tpu_custom_call.1} parent=5 // pred_check
        _
      $region10: #{tpu_custom_call.1} parent=5 // pred_check_branch
        %275 = sbr.rel (%p272) target = $region12
      $region11: #{tpu_custom_call.1} parent=5 // pred_region
        %s276 = ssub.s32 %s21, 1
        // Predicated region
        $region13: #{tpu_custom_call.1} parent=11 // pred_check
          %p277 = pneg %p42
        $region14: #{tpu_custom_call.1} parent=11 // pred_check_branch
          %279 = sbr.rel (%p277) target = $region16
        $region15: #{tpu_custom_call.1} parent=11 // pred_region
          %s281 = ssub.s32 128, 128
          %282 = vsyncadd [#allocation3], %s281
          %s283 = sshll.u32 [#allocation2], 4
          %s284 = int_to_ptr.vmem [resolvable:$true] %s283
          %289 = dma.hbm_to_vmem [thread:$0]  %s0, 128, %s284, [#allocation3], 64, 64, 4
        $region16: #{tpu_custom_call.1} parent=11 // pred_fallthru
          _
        // Predicated region
        $region17: #{tpu_custom_call.1} parent=11 // pred_check
          %p290 = pneg %p63
        $region18: #{tpu_custom_call.1} parent=11 // pred_check_branch
          %292 = sbr.rel (%p290) target = $region20
        $region19: #{tpu_custom_call.1} parent=11 // pred_region
          %s294 = ssub.s32 128, 128
          %295 = vsyncadd [#allocation6], %s294
          %s297 = sshll.u32 [#allocation5], 4
          %s298 = int_to_ptr.vmem [resolvable:$true] %s297
          %300 = dma.hbm_to_vmem [thread:$0]  %s1, 128, %s298, [#allocation6]
        $region20: #{tpu_custom_call.1} parent=11 // pred_fallthru
          _
        // Predicated region
        $region21: #{tpu_custom_call.1} parent=11 // pred_check
          %p301 = pneg %p84
        $region22: #{tpu_custom_call.1} parent=11 // pred_check_branch
          %303 = sbr.rel (%p301) target = $region24
        $region23: #{tpu_custom_call.1} parent=11 // pred_region
          _
        $region24: #{tpu_custom_call.1} parent=11 // pred_fallthru
          _
        // Predicated region
        $region25: #{tpu_custom_call.1} parent=11 // pred_check
          %p304 = pneg %p105
        $region26: #{tpu_custom_call.1} parent=11 // pred_check_branch
          %306 = sbr.rel (%p304) target = $region28
        $region27: #{tpu_custom_call.1} parent=11 // pred_region
          _
        $region28: #{tpu_custom_call.1} parent=11 // pred_fallthru
          _
        // Predicated region
        $region29: #{tpu_custom_call.1} parent=11 // pred_check
          %p307 = pneg %p152
        $region30: #{tpu_custom_call.1} parent=11 // pred_check_branch
          %309 = sbr.rel (%p307) target = $region32
        $region31: #{tpu_custom_call.1} parent=11 // pred_region
          _
        $region32: #{tpu_custom_call.1} parent=11 // pred_fallthru
          _
        // Predicated region
        $region33: #{tpu_custom_call.1} parent=11 // pred_check
          %p310 = pneg %p173
        $region34: #{tpu_custom_call.1} parent=11 // pred_check_branch
          %312 = sbr.rel (%p310) target = $region36
        $region35: #{tpu_custom_call.1} parent=11 // pred_region
          _
        $region36: #{tpu_custom_call.1} parent=11 // pred_fallthru
          _
        // Predicated region
        $region37: #{tpu_custom_call.1} parent=11 // pred_check
          %p313 = pneg %p194
        $region38: #{tpu_custom_call.1} parent=11 // pred_check_branch
          %315 = sbr.rel (%p313) target = $region40
        $region39: #{tpu_custom_call.1} parent=11 // pred_region
          _
        $region40: #{tpu_custom_call.1} parent=11 // pred_fallthru
          _
        // Predicated region
        $region41: #{tpu_custom_call.1} parent=11 // pred_check
          %p316 = pneg %p215
        $region42: #{tpu_custom_call.1} parent=11 // pred_check_branch
          %318 = sbr.rel (%p316) target = $region44
        $region43: #{tpu_custom_call.1} parent=11 // pred_region
          %s320 = ssub.s32 1024, 1024
          %321 = vsyncadd [#allocation6], %s320
          %s322 = sshll.u32 [#allocation8], 4
          %s323 = int_to_ptr.vmem [resolvable:$true] %s322
          %328 = dma.hbm_to_vmem [thread:$0]  %s8, 1024, %s323, [#allocation6], 64, 64, 4
        $region44: #{tpu_custom_call.1} parent=11 // pred_fallthru
          _
        // Predicated region
        $region45: #{tpu_custom_call.1} parent=11 // pred_check
          %p329 = pneg %p236
        $region46: #{tpu_custom_call.1} parent=11 // pred_check_branch
          %331 = sbr.rel (%p329) target = $region48
        $region47: #{tpu_custom_call.1} parent=11 // pred_region
          _
        $region48: #{tpu_custom_call.1} parent=11 // pred_fallthru
          _
      $region12: #{tpu_custom_call.1} parent=5 // pred_fallthru
        _
      %p332 = scmp.lt.s32.totalorder %s21, 2
      // Predicated region
      $region49: #{tpu_custom_call.1} parent=5 // pred_check
        %p333 = pneg %p332
      $region50: #{tpu_custom_call.1} parent=5 // pred_check_branch
        %335 = sbr.rel (%p333) target = $region52
      $region51: #{tpu_custom_call.1} parent=5 // pred_region
        // Predicated region
        $region53: #{tpu_custom_call.1} parent=51 // pred_check
          %p336 = pneg %p125
        $region54: #{tpu_custom_call.1} parent=51 // pred_check_branch
          %338 = sbr.rel (%p336) target = $region56
        $region55: #{tpu_custom_call.1} parent=51 // pred_region
          %s339 = sand.u32 %s21, 1
          %s340 = scalar_lea.sflag [#allocation3], %s339
          %s341 = sand.u32 %s115, 1
          %s342 = smul.addr %s341, 16
          %s343 = scalar_lea.vmem [#allocation7], %s342
          %s344 = smul.u32 2, %s21
          %s346 = ssub.s32 256, 256
          %347 = vsyncadd %s340, %s346
          %s348 = smul.addr %s344, 128
          %s349 = scalar_lea.hbm %s4, %s348
          %s350 = sshll.u32 %s343, 4
          %s351 = int_to_ptr.vmem [resolvable:$true] %s350
          %356 = dma.hbm_to_vmem [thread:$0]  %s349, 256, %s351, %s340, 128, 128, 8
        $region56: #{tpu_custom_call.1} parent=51 // pred_fallthru
          _
      $region52: #{tpu_custom_call.1} parent=5 // pred_fallthru
        _
      %p357 = scmp.le.s32.totalorder 1, %s21
      %p358 = scmp.lt.s32.totalorder %s21, 3
      %p359 = pnand %p357, %p358
      %p360 = pneg %p359
      // Predicated region
      $region57: #{tpu_custom_call.1} parent=5 // pred_check
        _
      $region58: #{tpu_custom_call.1} parent=5 // pred_check_branch
        %362 = sbr.rel (%p359) target = $region60
      $region59: #{tpu_custom_call.1} parent=5 // pred_region
        %s363 = ssub.s32 %s21, 1
        // Predicated region
        $region61: #{tpu_custom_call.1} parent=59 // pred_check
          %p364 = pneg %p42
        $region62: #{tpu_custom_call.1} parent=59 // pred_check_branch
          %366 = sbr.rel (%p364) target = $region64
        $region63: #{tpu_custom_call.1} parent=59 // pred_region
          %367 = dma.done [#allocation3], 128
        $region64: #{tpu_custom_call.1} parent=59 // pred_fallthru
          _
        // Predicated region
        $region65: #{tpu_custom_call.1} parent=59 // pred_check
          %p368 = pneg %p63
        $region66: #{tpu_custom_call.1} parent=59 // pred_check_branch
          %370 = sbr.rel (%p368) target = $region68
        $region67: #{tpu_custom_call.1} parent=59 // pred_region
          %371 = dma.done [#allocation6], 128
        $region68: #{tpu_custom_call.1} parent=59 // pred_fallthru
          _
        %s372 = sand.u32 %s26, 1
        %s373 = scalar_lea.sflag [#allocation3], %s372
        %s374 = sand.u32 %s118, 1
        %s375 = smul.addr %s374, 16
        %s376 = scalar_lea.vmem [#allocation7], %s375
        // Predicated region
        $region69: #{tpu_custom_call.1} parent=59 // pred_check
          %p377 = pneg %p131
        $region70: #{tpu_custom_call.1} parent=59 // pred_check_branch
          %379 = sbr.rel (%p377) target = $region72
        $region71: #{tpu_custom_call.1} parent=59 // pred_region
          %380 = dma.done %s373, 256
        $region72: #{tpu_custom_call.1} parent=59 // pred_fallthru
          _
        // Predicated region
        $region73: #{tpu_custom_call.1} parent=59 // pred_check
          %p381 = pneg %p215
        $region74: #{tpu_custom_call.1} parent=59 // pred_check_branch
          %383 = sbr.rel (%p381) target = $region76
        $region75: #{tpu_custom_call.1} parent=59 // pred_region
          %384 = dma.done [#allocation6], 1024
        $region76: #{tpu_custom_call.1} parent=59 // pred_fallthru
          _
        %p385 = pneg %p42
        %p386 = pneg %p39
        %p387 = pneg %p63
        %p388 = pneg %p60
        %p389 = pneg %p84
        %p390 = pneg %p81
        %p391 = pneg %p105
        %p392 = pneg %p102
        %s393 = sand.u32 %s26, 1
        %s394 = scalar_lea.sflag [#allocation3], %s393
        %s395 = sand.u32 %s118, 1
        %s396 = smul.addr %s395, 16
        %s397 = scalar_lea.vmem [#allocation7], %s396
        %p398 = pneg %p131
        %p399 = pneg %p128
        %p400 = pneg %p152
        %p401 = pneg %p149
        %p402 = pneg %p173
        %p403 = pneg %p170
        %p404 = pneg %p194
        %p405 = pneg %p191
        %p406 = pneg %p215
        %p407 = pneg %p212
        %p408 = pneg %p236
        %p409 = pneg %p233
        %p410 = pneg %p262
        %p411 = pneg %p259
        %s412 = sand.u32 %s249, 1
        %s413 = scalar_lea.sflag [#allocation4], %s412
        %s414 = sand.u32 %s249, 1
        %s415 = smul.addr %s414, 16
        %s416 = scalar_lea.vmem [#allocation9], %s415
        %s417 = smul.u32 2, %s26
        %s418 = smul.u32 2, %s26
        %v420 = vld [vmem:[%s376] sm:$0xff]
        %v421 = vld [vmem:[%s376 + $0x8] sm:$0xff]
        %v422 = vmul.f32 %v420, %v420
        %v423 = vmul.f32 %v421, %v421
        %vm424 = vcmask 64512
        %v425 = vsel %vm424, %v422, 0.0
        %426 = vadd.xlane.f32.xlu0 %v425
        %v427 = vpop.xlane.xlu0 %426
        %v428 = vsel %vm424, %v423, 0.0
        %429 = vadd.xlane.f32.xlu0 %v428
        %v430 = vpop.xlane.xlu0 %429
        %v431 = vld [vmem:[#allocation5] sm:$0xff]
        %v433 = vsel %vm424, %v420, 0
        %v436 = vsel %vm424, %v421, 0
        %438 = vmatprep.subr.mxu0 0.0
        %439 = vmatpush1.msra.mxu0 %v431
        %440 = vmatprep.subr.mxu0 0.0
        %441 = vmatpush1.msra.mxu0 0.0
        %442 = vmatprep.subr.mxu0 0.0
        %443 = vmatpush1.msra.mxu0 0.0
        %444 = vmatprep.subr.mxu0 0.0
        %445 = vmatpush1.msra.mxu0 0.0
        %446 = vmatprep.subr.mxu0 0.0
        %447 = vmatpush1.msra.mxu0 0.0
        %448 = vmatprep.subr.mxu0 0.0
        %449 = vmatpush1.msra.mxu0 0.0
        %450 = vmatprep.subr.mxu0 0.0
        %451 = vmatpush1.msra.mxu0 0.0
        %452 = vmatprep.subr.mxu0 0.0
        %453 = vmatpush1.msra.mxu0 0.0
        %454 = vmatprep.subr.mxu0 0.0
        %455 = vmatpush1.msra.mxu0 0.0
        %456 = vmatprep.subr.mxu0 0.0
        %457 = vmatpush1.msra.mxu0 0.0
        %458 = vmatprep.subr.mxu0 0.0
        %459 = vmatpush1.msra.mxu0 0.0
        %460 = vmatprep.subr.mxu0 0.0
        %461 = vmatpush1.msra.mxu0 0.0
        %462 = vmatprep.subr.mxu0 0.0
        %463 = vmatpush1.msra.mxu0 0.0
        %464 = vmatprep.subr.mxu0 0.0
        %465 = vmatpush1.msra.mxu0 0.0
        %466 = vmatprep.subr.mxu0 0.0
        %467 = vmatpush1.msra.mxu0 0.0
        %468 = vmatprep.subr.mxu0 0.0
        %469 = vmatpush1.msra.mxu0 0.0
        %470 = vmatprep.subr.mxu0 0.0
        %471 = vmatpush1.msra.mxu0 0.0
        %472 = vmatprep.subr.mxu0 0.0
        %473 = vmatpush1.msra.mxu0 0.0
        %474 = vmatprep.subr.mxu0 0.0
        %475 = vmatpush1.msra.mxu0 0.0
        %476 = vmatprep.subr.mxu0 0.0
        %477 = vmatpush1.msra.mxu0 0.0
        %478 = vmatprep.subr.mxu0 0.0
        %479 = vmatpush1.msra.mxu0 0.0
        %480 = vmatprep.subr.mxu0 0.0
        %481 = vmatpush1.msra.mxu0 0.0
        %482 = vmatprep.subr.mxu0 0.0
        %483 = vmatpush1.msra.mxu0 0.0
        %484 = vmatprep.subr.mxu0 0.0
        %485 = vmatpush1.msra.mxu0 0.0
        %486 = vmatprep.subr.mxu0 0.0
        %487 = vmatpush1.msra.mxu0 0.0
        %488 = vmatprep.subr.mxu0 0.0
        %489 = vmatpush1.msra.mxu0 0.0
        %490 = vmatprep.subr.mxu0 0.0
        %491 = vmatpush1.msra.mxu0 0.0
        %492 = vmatprep.subr.mxu0 0.0
        %493 = vmatpush1.msra.mxu0 0.0
        %494 = vmatprep.subr.mxu0 0.0
        %495 = vmatpush1.msra.mxu0 0.0
        %496 = vmatprep.subr.mxu0 0.0
        %497 = vmatpush1.msra.mxu0 0.0
        %498 = vmatprep.subr.mxu0 0.0
        %499 = vmatpush1.msra.mxu0 0.0
        %500 = vmatprep.subr.mxu0 0.0
        %501 = vmatpush1.msra.mxu0 0.0
        %502 = vmatprep.mubr.f32.mxu0 0.0
        %503 = vmatmul.mubr.f32.gmra.mrb[0].mxu0 %v433
        %v504 = vpop.f32.mrb[0].mxu0
        %v505 = vadd.f32 0.0, %v504
        %v506 = vpop.f32.mrb[0].mxu0
        %507 = vmatprep.mubr.f32.mxu0 0.0
        %508 = vmatmul.mubr.f32.gmra.mrb[0].mxu0 %v436
        %v509 = vpop.f32.mrb[0].mxu0
        %v510 = vadd.f32 0.0, %v509
        %v511 = vpop.f32.mrb[0].mxu0
        %512 = vdwg.mxu0
        %v513 = vld [vmem:[%s2] sm:$0x1]
        %v515 = vlaneseq
        %v516 = vshrl.u32 %v515, 7
        %v517 = vsub.s32 0, %v516
        %v518 = vrot.slane %v513, %v517
        %v520 = vadd.f32 %v427, %v518
        %v521 = vadd.f32 %v430, %v518
        %v522 = vmul.f32 %v505, 2.0
        %v523 = vmul.f32 %v510, 2.0
        %v524 = vsub.f32 %v520, %v522
        %v525 = vsub.f32 %v521, %v523
        %v526 = vmax.f32 %v524, 0.0
        %v527 = vmax.f32 %v525, 0.0
        %v528 = vld [vmem:[%s3] sm:$0x1]
        %529 = vset.pattern.permute.xlu0 16
        %530 = vperm.xlu0 %529, %v420
        %v531 = vpop.permute.xlu0 %530
        %533 = vset.pattern.permute.xlu0 16
        %534 = vperm.xlu0 %533, %v421
        %v535 = vpop.permute.xlu0 %534
        %v538 = vlaneseq
        %v539 = vshrl.u32 %v538, 7
        %v540 = vsub.s32 0, %v539
        %v541 = vrot.slane %v528, %v540
        %vm543 = vcmp.eq.f32.partialorder %v531, %v541
        %vm544 = vcmp.eq.f32.partialorder %v535, %v541
        %v545 = vsel %vm543, %v526, 1e+30
        %v546 = vsel %vm544, %v527, 1e+30
        %vm547 = vcmask 130048
        %v548 = vsel %vm547, %v545, inf
        %549 = vmin.xlane.f32.xlu0 %v548
        %v550 = vpop.xlane.xlu0 %549
        %v551 = vsel %vm547, %v546, inf
        %552 = vmin.xlane.f32.xlu0 %v551
        %v553 = vpop.xlane.xlu0 %552
        %v554 = vmax.f32 %v550, 0.0
        %v555 = vmax.f32 %v553, 0.0
        %v556 = vrsqrt.pop %v554
        %v557 = vrsqrt.pop %v555
        %v558 = vmin.f32 %v556, 1e+10
        %v559 = vmin.f32 %v557, 1e+10
        %vm560 = vcmp.eq.f32.partialorder %v545, %v550
        %vm561 = vcmp.eq.f32.partialorder %v546, %v553
        %vm562 = vcmp.lt.f32.partialorder %v550, 1e+30
        %vm563 = vcmp.lt.f32.partialorder %v553, 1e+30
        %v564 = vsel %vm562, 1, 0
        %v565 = vsel %vm563, 1, 0
        %vm566 = vcmp.eq.s32.totalorder %v564, 1
        %vm567 = vcmp.eq.s32.totalorder %v565, 1
        %vm568 = vmand %vm560, %vm566
        %vm569 = vmand %vm561, %vm567
        %v570 = vsel %vm568, %v558, 0.0
        %v571 = vsel %vm569, %v559, 0.0
        %v572 = vsel %vm568, 1e+30, %v545
        %v573 = vsel %vm569, 1e+30, %v546
        %v574 = vsel %vm547, %v572, inf
        %575 = vmin.xlane.f32.xlu0 %v574
        %v576 = vpop.xlane.xlu0 %575
        %v577 = vsel %vm547, %v573, inf
        %578 = vmin.xlane.f32.xlu0 %v577
        %v579 = vpop.xlane.xlu0 %578
        %v580 = vmax.f32 %v576, 0.0
        %v581 = vmax.f32 %v579, 0.0
        %v582 = vrsqrt.pop %v580
        %v583 = vrsqrt.pop %v581
        %v584 = vmin.f32 %v582, 1e+10
        %v585 = vmin.f32 %v583, 1e+10
        %vm586 = vcmp.eq.f32.partialorder %v572, %v576
        %vm587 = vcmp.eq.f32.partialorder %v573, %v579
        %vm588 = vcmp.lt.f32.partialorder %v576, 1e+30
        %vm589 = vcmp.lt.f32.partialorder %v579, 1e+30
        %v590 = vsel %vm588, 1, 0
        %v591 = vsel %vm589, 1, 0
        %vm592 = vcmp.eq.s32.totalorder %v590, 1
        %vm593 = vcmp.eq.s32.totalorder %v591, 1
        %vm594 = vmand %vm586, %vm592
        %vm595 = vmand %vm587, %vm593
        %v596 = vsel %vm594, %v584, %v570
        %v597 = vsel %vm595, %v585, %v571
        %v598 = vsel %vm594, 1e+30, %v572
        %v599 = vsel %vm595, 1e+30, %v573
        %v600 = vsel %vm547, %v598, inf
        %601 = vmin.xlane.f32.xlu0 %v600
        %v602 = vpop.xlane.xlu0 %601
        %v603 = vsel %vm547, %v599, inf
        %604 = vmin.xlane.f32.xlu0 %v603
        %v605 = vpop.xlane.xlu0 %604
        %v606 = vmax.f32 %v602, 0.0
        %v607 = vmax.f32 %v605, 0.0
        %v608 = vrsqrt.pop %v606
        %v609 = vrsqrt.pop %v607
        %v610 = vmin.f32 %v608, 1e+10
        %v611 = vmin.f32 %v609, 1e+10
        %vm612 = vcmp.eq.f32.partialorder %v598, %v602
        %vm613 = vcmp.eq.f32.partialorder %v599, %v605
        %vm614 = vcmp.lt.f32.partialorder %v602, 1e+30
        %vm615 = vcmp.lt.f32.partialorder %v605, 1e+30
        %v616 = vsel %vm614, 1, 0
        %v617 = vsel %vm615, 1, 0
        %vm618 = vcmp.eq.s32.totalorder %v616, 1
        %vm619 = vcmp.eq.s32.totalorder %v617, 1
        %vm620 = vmand %vm612, %vm618
        %vm621 = vmand %vm613, %vm619
        %v622 = vsel %vm620, %v610, %v596
        %v623 = vsel %vm621, %v611, %v597
        %v624 = vsel %vm547, %v622, 0.0
        %625 = vadd.xlane.f32.xlu0 %v624
        %v626 = vpop.xlane.xlu0 %625
        %v627 = vsel %vm547, %v623, 0.0
        %628 = vadd.xlane.f32.xlu0 %v627
        %v629 = vpop.xlane.xlu0 %628
        %v630 = vadd.f32 %v626, 1e-16
        %v631 = vadd.f32 %v629, 1e-16
        %v632 = vrcp.pop %v630
        %v633 = vrcp.pop %v631
        %v634 = vpack.c.bf16 %v623, %v622
        %v635 = vld [vmem:[#allocation2] sm:$0xf]
        %v636 = vld [vmem:[#allocation2 + $0x4] sm:$0xf]
        %v639 = vunpack.c.l.b16 %v635
        %v640 = vunpack.c.l.b16 %v636
        %v641 = vpack.c.b16 %v640, %v639
        %v644 = vsel %vm547, %v634, 0
        %646 = vmatprep.subr.bf16.mxu0 0
        %647 = vmatpush1.bf16.msra.mxu0 %v641
        %648 = vmatprep.subr.bf16.mxu0 0
        %649 = vmatpush1.bf16.msra.mxu0 0
        %650 = vmatprep.subr.bf16.mxu0 0
        %651 = vmatpush1.bf16.msra.mxu0 0
        %652 = vmatprep.subr.bf16.mxu0 0
        %653 = vmatpush1.bf16.msra.mxu0 0
        %654 = vmatprep.subr.bf16.mxu0 0
        %655 = vmatpush1.bf16.msra.mxu0 0
        %656 = vmatprep.subr.bf16.mxu0 0
        %657 = vmatpush1.bf16.msra.mxu0 0
        %658 = vmatprep.subr.bf16.mxu0 0
        %659 = vmatpush1.bf16.msra.mxu0 0
        %660 = vmatprep.subr.bf16.mxu0 0
        %661 = vmatpush1.bf16.msra.mxu0 0
        %662 = vmatprep.subr.bf16.mxu0 0
        %663 = vmatpush1.bf16.msra.mxu0 0
        %664 = vmatprep.subr.bf16.mxu0 0
        %665 = vmatpush1.bf16.msra.mxu0 0
        %666 = vmatprep.subr.bf16.mxu0 0
        %667 = vmatpush1.bf16.msra.mxu0 0
        %668 = vmatprep.subr.bf16.mxu0 0
        %669 = vmatpush1.bf16.msra.mxu0 0
        %670 = vmatprep.subr.bf16.mxu0 0
        %671 = vmatpush1.bf16.msra.mxu0 0
        %672 = vmatprep.subr.bf16.mxu0 0
        %673 = vmatpush1.bf16.msra.mxu0 0
        %674 = vmatprep.subr.bf16.mxu0 0
        %675 = vmatpush1.bf16.msra.mxu0 0
        %676 = vmatprep.subr.bf16.mxu0 0
        %677 = vmatpush1.bf16.msra.mxu0 0
        %678 = vmatprep.mubr.bf16.mxu0 0
        %679 = vmatmul.mubr.bf16.gmra.mrb[0].mxu0 %v644
        %v680 = vpop.f32.mrb[0].mxu0
        %v681 = vadd.f32 0.0, %v680
        %v682 = vpop.f32.mrb[0].mxu0
        %v683 = vpop.f32.mrb[0].mxu0
        %v684 = vadd.f32 0.0, %v683
        %v685 = vpop.f32.mrb[0].mxu0
        %686 = vdwg.mxu0
        %v687 = vmul.f32 %v681, %v632
        %v688 = vmul.f32 %v684, %v633
        %v689 = vld [vmem:[%s5] sm:$0xff]
        %690 = vrot.lane.b32.xlu0 %v420, 120
        %v691 = vpop.permute.xlu0 %690
        %692 = vrot.lane.b32.xlu0 %v421, 120
        %v693 = vpop.permute.xlu0 %692
        %v694 = vsel %vm424, %v691, 0
        %v696 = vsel %vm424, %v693, 0
        %698 = vmatprep.subr.mxu0 0.0
        %699 = vmatpush1.msra.mxu0 %v689
        %700 = vmatprep.subr.mxu0 0.0
        %701 = vmatpush1.msra.mxu0 0.0
        %702 = vmatprep.subr.mxu0 0.0
        %703 = vmatpush1.msra.mxu0 0.0
        %704 = vmatprep.subr.mxu0 0.0
        %705 = vmatpush1.msra.mxu0 0.0
        %706 = vmatprep.subr.mxu0 0.0
        %707 = vmatpush1.msra.mxu0 0.0
        %708 = vmatprep.subr.mxu0 0.0
        %709 = vmatpush1.msra.mxu0 0.0
        %710 = vmatprep.subr.mxu0 0.0
        %711 = vmatpush1.msra.mxu0 0.0
        %712 = vmatprep.subr.mxu0 0.0
        %713 = vmatpush1.msra.mxu0 0.0
        %714 = vmatprep.subr.mxu0 0.0
        %715 = vmatpush1.msra.mxu0 0.0
        %716 = vmatprep.subr.mxu0 0.0
        %717 = vmatpush1.msra.mxu0 0.0
        %718 = vmatprep.subr.mxu0 0.0
        %719 = vmatpush1.msra.mxu0 0.0
        %720 = vmatprep.subr.mxu0 0.0
        %721 = vmatpush1.msra.mxu0 0.0
        %722 = vmatprep.subr.mxu0 0.0
        %723 = vmatpush1.msra.mxu0 0.0
        %724 = vmatprep.subr.mxu0 0.0
        %725 = vmatpush1.msra.mxu0 0.0
        %726 = vmatprep.subr.mxu0 0.0
        %727 = vmatpush1.msra.mxu0 0.0
        %728 = vmatprep.subr.mxu0 0.0
        %729 = vmatpush1.msra.mxu0 0.0
        %730 = vmatprep.subr.mxu0 0.0
        %731 = vmatpush1.msra.mxu0 0.0
        %732 = vmatprep.subr.mxu0 0.0
        %733 = vmatpush1.msra.mxu0 0.0
        %734 = vmatprep.subr.mxu0 0.0
        %735 = vmatpush1.msra.mxu0 0.0
        %736 = vmatprep.subr.mxu0 0.0
        %737 = vmatpush1.msra.mxu0 0.0
        %738 = vmatprep.subr.mxu0 0.0
        %739 = vmatpush1.msra.mxu0 0.0
        %740 = vmatprep.subr.mxu0 0.0
        %741 = vmatpush1.msra.mxu0 0.0
        %742 = vmatprep.subr.mxu0 0.0
        %743 = vmatpush1.msra.mxu0 0.0
        %744 = vmatprep.subr.mxu0 0.0
        %745 = vmatpush1.msra.mxu0 0.0
        %746 = vmatprep.subr.mxu0 0.0
        %747 = vmatpush1.msra.mxu0 0.0
        %748 = vmatprep.subr.mxu0 0.0
        %749 = vmatpush1.msra.mxu0 0.0
        %750 = vmatprep.subr.mxu0 0.0
        %751 = vmatpush1.msra.mxu0 0.0
        %752 = vmatprep.subr.mxu0 0.0
        %753 = vmatpush1.msra.mxu0 0.0
        %754 = vmatprep.subr.mxu0 0.0
        %755 = vmatpush1.msra.mxu0 0.0
        %756 = vmatprep.subr.mxu0 0.0
        %757 = vmatpush1.msra.mxu0 0.0
        %758 = vmatprep.subr.mxu0 0.0
        %759 = vmatpush1.msra.mxu0 0.0
        %760 = vmatprep.subr.mxu0 0.0
        %761 = vmatpush1.msra.mxu0 0.0
        %762 = vmatprep.mubr.f32.mxu0 0.0
        %763 = vmatmul.mubr.f32.gmra.mrb[0].mxu0 %v694
        %v764 = vpop.f32.mrb[0].mxu0
        %v765 = vadd.f32 0.0, %v764
        %v766 = vpop.f32.mrb[0].mxu0
        %767 = vmatprep.mubr.f32.mxu0 0.0
        %768 = vmatmul.mubr.f32.gmra.mrb[0].mxu0 %v696
        %v769 = vpop.f32.mrb[0].mxu0
        %v770 = vadd.f32 0.0, %v769
        %v771 = vpop.f32.mrb[0].mxu0
        %772 = vdwg.mxu0
        %v773 = vadd.f32 %v687, %v765
        %v774 = vadd.f32 %v688, %v770
        %v775 = vld [vmem:[%s6] sm:$0xff]
        %776 = vmatprep.subr.mxu0 0.0
        %777 = vmatpush1.msra.mxu0 %v775
        %778 = vmatprep.subr.mxu0 0.0
        %779 = vmatpush1.msra.mxu0 0.0
        %780 = vmatprep.subr.mxu0 0.0
        %781 = vmatpush1.msra.mxu0 0.0
        %782 = vmatprep.subr.mxu0 0.0
        %783 = vmatpush1.msra.mxu0 0.0
        %784 = vmatprep.subr.mxu0 0.0
        %785 = vmatpush1.msra.mxu0 0.0
        %786 = vmatprep.subr.mxu0 0.0
        %787 = vmatpush1.msra.mxu0 0.0
        %788 = vmatprep.subr.mxu0 0.0
        %789 = vmatpush1.msra.mxu0 0.0
        %790 = vmatprep.subr.mxu0 0.0
        %791 = vmatpush1.msra.mxu0 0.0
        %792 = vmatprep.subr.mxu0 0.0
        %793 = vmatpush1.msra.mxu0 0.0
        %794 = vmatprep.subr.mxu0 0.0
        %795 = vmatpush1.msra.mxu0 0.0
        %796 = vmatprep.subr.mxu0 0.0
        %797 = vmatpush1.msra.mxu0 0.0
        %798 = vmatprep.subr.mxu0 0.0
        %799 = vmatpush1.msra.mxu0 0.0
        %800 = vmatprep.subr.mxu0 0.0
        %801 = vmatpush1.msra.mxu0 0.0
        %802 = vmatprep.subr.mxu0 0.0
        %803 = vmatpush1.msra.mxu0 0.0
        %804 = vmatprep.subr.mxu0 0.0
        %805 = vmatpush1.msra.mxu0 0.0
        %806 = vmatprep.subr.mxu0 0.0
        %807 = vmatpush1.msra.mxu0 0.0
        %808 = vmatprep.subr.mxu0 0.0
        %809 = vmatpush1.msra.mxu0 0.0
        %810 = vmatprep.subr.mxu0 0.0
        %811 = vmatpush1.msra.mxu0 0.0
        %812 = vmatprep.subr.mxu0 0.0
        %813 = vmatpush1.msra.mxu0 0.0
        %814 = vmatprep.subr.mxu0 0.0
        %815 = vmatpush1.msra.mxu0 0.0
        %816 = vmatprep.subr.mxu0 0.0
        %817 = vmatpush1.msra.mxu0 0.0
        %818 = vmatprep.subr.mxu0 0.0
        %819 = vmatpush1.msra.mxu0 0.0
        %820 = vmatprep.subr.mxu0 0.0
        %821 = vmatpush1.msra.mxu0 0.0
        %822 = vmatprep.subr.mxu0 0.0
        %823 = vmatpush1.msra.mxu0 0.0
        %824 = vmatprep.subr.mxu0 0.0
        %825 = vmatpush1.msra.mxu0 0.0
        %826 = vmatprep.subr.mxu0 0.0
        %827 = vmatpush1.msra.mxu0 0.0
        %828 = vmatprep.subr.mxu0 0.0
        %829 = vmatpush1.msra.mxu0 0.0
        %830 = vmatprep.subr.mxu0 0.0
        %831 = vmatpush1.msra.mxu0 0.0
        %832 = vmatprep.subr.mxu0 0.0
        %833 = vmatpush1.msra.mxu0 0.0
        %834 = vmatprep.subr.mxu0 0.0
        %835 = vmatpush1.msra.mxu0 0.0
        %836 = vmatprep.subr.mxu0 0.0
        %837 = vmatpush1.msra.mxu0 0.0
        %838 = vmatprep.subr.mxu0 0.0
        %839 = vmatpush1.msra.mxu0 0.0
        %840 = vmatprep.mubr.f32.mxu0 0.0
        %841 = vmatmul.mubr.f32.gmra.mrb[0].mxu0 %v433
        %v842 = vpop.f32.mrb[0].mxu0
        %v843 = vadd.f32 0.0, %v842
        %v844 = vpop.f32.mrb[0].mxu0
        %845 = vmatprep.mubr.f32.mxu0 0.0
        %846 = vmatmul.mubr.f32.gmra.mrb[0].mxu0 %v436
        %v847 = vpop.f32.mrb[0].mxu0
        %v848 = vadd.f32 0.0, %v847
        %v849 = vpop.f32.mrb[0].mxu0
        %850 = vdwg.mxu0
        %v851 = vadd.f32 %v773, %v843
        %v852 = vadd.f32 %v774, %v848
        %v853 = vld [vmem:[%s7] sm:$0x1]
        %v855 = vlaneseq
        %v856 = vshrl.u32 %v855, 7
        %v857 = vsub.s32 0, %v856
        %v858 = vrot.slane %v853, %v857
        %v860 = vadd.f32 %v851, %v858
        %v861 = vadd.f32 %v852, %v858
        %v862 = vmax.f32 %v860, 0.0
        %v863 = vmax.f32 %v861, 0.0
        %v864 = vpack.c.bf16 %v863, %v862
        %v865 = vld [vmem:[#allocation8] sm:$0xf]
        %v866 = vld [vmem:[#allocation8 + $0x4] sm:$0xf]
        %v867 = vld [vmem:[#allocation8 + $0x8] sm:$0xf]
        %v868 = vld [vmem:[#allocation8 + $0xc] sm:$0xf]
        %v869 = vld [vmem:[#allocation8 + $0x10] sm:$0xf]
        %v870 = vld [vmem:[#allocation8 + $0x14] sm:$0xf]
        %v871 = vld [vmem:[#allocation8 + $0x18] sm:$0xf]
        %v872 = vld [vmem:[#allocation8 + $0x1c] sm:$0xf]
        %v873 = vld [vmem:[#allocation8 + $0x20] sm:$0xf]
        %v874 = vld [vmem:[#allocation8 + $0x24] sm:$0xf]
        %v875 = vld [vmem:[#allocation8 + $0x28] sm:$0xf]
        %v876 = vld [vmem:[#allocation8 + $0x2c] sm:$0xf]
        %v877 = vld [vmem:[#allocation8 + $0x30] sm:$0xf]
        %v878 = vld [vmem:[#allocation8 + $0x34] sm:$0xf]
        %v879 = vld [vmem:[#allocation8 + $0x38] sm:$0xf]
        %v880 = vld [vmem:[#allocation8 + $0x3c] sm:$0xf]
        %v881 = vld [vmem:[%s9] sm:$0x1]
        %v883 = vlaneseq
        %v884 = vshrl.u32 %v883, 7
        %v885 = vsub.s32 0, %v884
        %v886 = vrot.slane %v881, %v885
        %v904 = vunpack.c.l.b16 %v865
        %v905 = vunpack.c.l.b16 %v866
        %v906 = vunpack.c.l.b16 %v867
        %v907 = vunpack.c.l.b16 %v868
        %v908 = vunpack.c.l.b16 %v869
        %v909 = vunpack.c.l.b16 %v870
        %v910 = vunpack.c.l.b16 %v871
        %v911 = vunpack.c.l.b16 %v872
        %v912 = vunpack.c.l.b16 %v873
        %v913 = vunpack.c.l.b16 %v874
        %v914 = vunpack.c.l.b16 %v875
        %v915 = vunpack.c.l.b16 %v876
        %v916 = vunpack.c.l.b16 %v877
        %v917 = vunpack.c.l.b16 %v878
        %v918 = vunpack.c.l.b16 %v879
        %v919 = vunpack.c.l.b16 %v880
        %v920 = vpack.c.b16 %v905, %v904
        %v921 = vpack.c.b16 %v907, %v906
        %v922 = vpack.c.b16 %v909, %v908
        %v923 = vpack.c.b16 %v911, %v910
        %v924 = vpack.c.b16 %v913, %v912
        %v925 = vpack.c.b16 %v915, %v914
        %v926 = vpack.c.b16 %v917, %v916
        %v927 = vpack.c.b16 %v919, %v918
        %936 = vmatprep.subr.bf16.mxu0 0
        %937 = vmatpush1.bf16.msra.mxu0 %v920
        %938 = vmatprep.subr.bf16.mxu0 0
        %939 = vmatpush1.bf16.msra.mxu0 %v921
        %940 = vmatprep.subr.bf16.mxu0 0
        %941 = vmatpush1.bf16.msra.mxu0 %v922
        %942 = vmatprep.subr.bf16.mxu0 0
        %943 = vmatpush1.bf16.msra.mxu0 %v923
        %944 = vmatprep.subr.bf16.mxu0 0
        %945 = vmatpush1.bf16.msra.mxu0 %v924
        %946 = vmatprep.subr.bf16.mxu0 0
        %947 = vmatpush1.bf16.msra.mxu0 %v925
        %948 = vmatprep.subr.bf16.mxu0 0
        %949 = vmatpush1.bf16.msra.mxu0 %v926
        %950 = vmatprep.subr.bf16.mxu0 0
        %951 = vmatpush1.bf16.msra.mxu0 %v927
        %952 = vmatprep.subr.bf16.mxu0 0
        %953 = vmatpush1.bf16.msra.mxu0 0
        %954 = vmatprep.subr.bf16.mxu0 0
        %955 = vmatpush1.bf16.msra.mxu0 0
        %956 = vmatprep.subr.bf16.mxu0 0
        %957 = vmatpush1.bf16.msra.mxu0 0
        %958 = vmatprep.subr.bf16.mxu0 0
        %959 = vmatpush1.bf16.msra.mxu0 0
        %960 = vmatprep.subr.bf16.mxu0 0
        %961 = vmatpush1.bf16.msra.mxu0 0
        %962 = vmatprep.subr.bf16.mxu0 0
        %963 = vmatpush1.bf16.msra.mxu0 0
        %964 = vmatprep.subr.bf16.mxu0 0
        %965 = vmatpush1.bf16.msra.mxu0 0
        %966 = vmatprep.subr.bf16.mxu0 0
        %967 = vmatpush1.bf16.msra.mxu0 0
        %968 = vmatprep.mubr.bf16.mxu0 0
        %969 = vmatmul.mubr.bf16.gmra.mrb[0].mxu0 %v864
        %v970 = vpop.f32.mrb[0].mxu0
        %v971 = vadd.f32 %v886, %v970
        %v972 = vpop.f32.mrb[0].mxu0
        %v973 = vpop.f32.mrb[0].mxu0
        %v974 = vadd.f32 %v886, %v973
        %v975 = vpop.f32.mrb[0].mxu0
        %976 = vdwg.mxu0
        %v977 = vmax.f32 %v971, 0.0
        %v978 = vmax.f32 %v974, 0.0
        %979 = vst [vmem:[%s416] sm:$0xff] %v977
        %980 = vst [vmem:[%s416 + $0x8] sm:$0xff] %v978
        %s981 = sand.u32 %s249, 1
        %s982 = scalar_lea.sflag [#allocation4], %s981
        %s983 = sand.u32 %s249, 1
        %s984 = smul.addr %s983, 16
        %s985 = scalar_lea.vmem [#allocation9], %s984
        // Predicated region
        $region77: #{tpu_custom_call.1} parent=59 // pred_check
          %p986 = pneg %p259
        $region78: #{tpu_custom_call.1} parent=59 // pred_check_branch
          %988 = sbr.rel (%p986) target = $region80
        $region79: #{tpu_custom_call.1} parent=59 // pred_region
          %s989 = smul.u32 2, %s26
          %s991 = ssub.s32 256, 256
          %992 = vsyncadd %s982, %s991
          %s993 = smul.addr %s989, 128
          %s994 = scalar_lea.hbm %s10, %s993
          %s995 = sshll.u32 %s985, 4
          %s996 = int_to_ptr.vmem [resolvable:$true] %s995
          %1001 = dma.vmem_to_hbm [thread:$0]  %s996, 256, %s994, %s982, 128, 128, 8
        $region80: #{tpu_custom_call.1} parent=59 // pred_fallthru
          _
      $region60: #{tpu_custom_call.1} parent=5 // pred_fallthru
        _
      %p1002 = scmp.le.s32.totalorder 2, %s21
      // Predicated region
      $region81: #{tpu_custom_call.1} parent=5 // pred_check
        %p1003 = pneg %p1002
      $region82: #{tpu_custom_call.1} parent=5 // pred_check_branch
        %1005 = sbr.rel (%p1003) target = $region84
      $region83: #{tpu_custom_call.1} parent=5 // pred_region
        %s1006 = ssub.s32 %s21, 2
        // Predicated region
        $region85: #{tpu_custom_call.1} parent=83 // pred_check
          %p1007 = pneg %p265
        $region86: #{tpu_custom_call.1} parent=83 // pred_check_branch
          %1009 = sbr.rel (%p1007) target = $region88
        $region87: #{tpu_custom_call.1} parent=83 // pred_region
          %s1010 = sand.u32 %s250, 1
          %s1011 = scalar_lea.sflag [#allocation4], %s1010
          %s1012 = sand.u32 %s250, 1
          %s1013 = smul.addr %s1012, 16
          %s1014 = scalar_lea.vmem [#allocation9], %s1013
          %1015 = dma.done %s1011, 256
        $region88: #{tpu_custom_call.1} parent=83 // pred_fallthru
          _
      $region84: #{tpu_custom_call.1} parent=5 // pred_fallthru
        _
    $region6: #{tpu_custom_call.1} parent=1 // loop_footer
      %s25 = sadd.s32 1, %s21
    $region7: #{tpu_custom_call.1} parent=1 // loop_footer_branch
      %20 = sbr.rel target = $region3
    $region8: #{tpu_custom_call.1} parent=1 // loop_exit
      _
    %1016 = vsyncpa [#allocation3], 1
    %s1017 = scalar_lea.sflag [#allocation3], 1
    %1018 = vsyncpa %s1017, 1
    %1019 = vsyncpa [#allocation6], 1
    %1020 = vsyncpa [#allocation4], 1
    %s1021 = scalar_lea.sflag [#allocation4], 1
    %1022 = vsyncpa %s1021, 1

</llo_original>
